<compile_context>
chip_gen: v6e
topology: v6e:2x2x1
jax: 0.10.0
libtpu: 0.0.40
codegen_flags: <defaults>
</compile_context>

<pallas_src>
import functools

import jax
import jax.numpy as jnp
from jax import lax
from jax.experimental import pallas as pl
from jax.experimental.pallas import tpu as pltpu


def _round_up(x, m):
    return ((x + m - 1) // m) * m


# --------------------------------------------------------------------------
# Kernel 1: input projection for all timesteps (one big MXU matmul per chunk)
#   gi = x @ W_ih^T + b_ih         x: (rows, D) bf16,  out: (rows, 3*Hp) f32
# --------------------------------------------------------------------------
def input_projection_kernel(x_ref, wih_ref, bih_ref, gi_ref):
    gi_ref[...] = (
        jnp.dot(x_ref[...], wih_ref[...], preferred_element_type=jnp.float32)
        + bih_ref[...]
    )


# --------------------------------------------------------------------------
# Kernel 2: GRU recurrence over time chunks. The output block (final hidden
# state) is VMEM-resident across the "arbitrary" time axis and doubles as the
# running hidden-state accumulator (zeroed at t == 0).
# --------------------------------------------------------------------------
def gru_recurrent_kernel(gi_ref, whh_ref, bhh_ref, hn_ref, *,
                         hp, t_chunk, seq_len):
    t = pl.program_id(1)

    @pl.when(t == 0)
    def _():
        # PyTorch nn.GRU default initial hidden state is zeros.
        hn_ref[...] = jnp.zeros_like(hn_ref)

    # Hoist constant loads out of the inner loop.
    whh = whh_ref[...]                 # (Hp, 3Hp) bf16
    bhh = bhh_ref[...]                 # (1, 3Hp) f32
    needs_mask = (seq_len % t_chunk) != 0
    base = t * t_chunk

    def step(i, h_prev):
        gi = gi_ref[i]                 # (bt, 3Hp) f32, precomputed input proj.
        gh = jnp.dot(h_prev.astype(whh.dtype), whh,
                     preferred_element_type=jnp.float32) + bhh

        # Lane-aligned gate slices (Hp is a multiple of 128).
        i_r, i_z, i_n = gi[:, :hp], gi[:, hp:2 * hp], gi[:, 2 * hp:]
        h_r, h_z, h_n = gh[:, :hp], gh[:, hp:2 * hp], gh[:, 2 * hp:]

        # Gate math kept in f32 (EUP sigmoid/tanh; v5e has no bf16 VPU/EUP).
        r = jax.nn.sigmoid(i_r + h_r)
        z = jax.nn.sigmoid(i_z + h_z)
        n = jnp.tanh(i_n + r * h_n)
        h_new = (1.0 - z) * n + z * h_prev
        if needs_mask:  # static: only emitted when seq_len % t_chunk != 0
            h_new = jnp.where(base + i < seq_len, h_new, h_prev)
        return h_new

    hn_ref[...] = lax.fori_loop(0, t_chunk, step, hn_ref[...], unroll=True)


# --------------------------------------------------------------------------
# Kernel 3: classifier + softmax epilogue on the final hidden state.
# --------------------------------------------------------------------------
def classifier_softmax_kernel(h_ref, wc_ref, bc_ref, prob_ref):
    logits = (
        jnp.dot(h_ref[...].astype(wc_ref.dtype), wc_ref[...],
                preferred_element_type=jnp.float32)
        + bc_ref[...]                  # padded label columns carry -1e30 bias
    )
    m = jnp.max(logits, axis=-1, keepdims=True)
    e = jnp.exp(logits - m)
    s = jnp.sum(e, axis=-1, keepdims=True)
    prob_ref[...] = e * pl.reciprocal(s, approx=True)


# --------------------------------------------------------------------------
# Wrapper
# --------------------------------------------------------------------------
def gru_model_forward(input_ids, params, *, t_chunk=8):
    """input_ids: (B, S) int32.  Returns prob: (B, n_label) float32."""
    emb = params["embedding"]          # (V, D)
    w_ih = params["w_ih"]              # (3H, D)  PyTorch layout
    w_hh = params["w_hh"]              # (3H, H)
    b_ih = params["b_ih"]              # (3H,)
    b_hh = params["b_hh"]              # (3H,)
    w_c = params["w_c"]                # (n_label, H)
    b_c = params["b_c"]                # (n_label,)

    B, S = input_ids.shape
    D = emb.shape[1]
    H = w_hh.shape[1]
    n_label = w_c.shape[0]

    # Padded / lane-aligned sizes.
    Hp = _round_up(H, 128)             # gates live at 128-aligned lane offsets
    Lp = _round_up(n_label, 128)
    Bp = _round_up(B, 8)               # clean sublane tiles
    t_chunk = min(t_chunk, S) if S > 0 else 1
    Sp = _round_up(S, t_chunk)

    # Batch tiling: split batch across two tiles when big enough (v7x 2x TC).
    bt = Bp // 2 if Bp % 16 == 0 else Bp
    grid_b = Bp // bt
    grid_t = Sp // t_chunk

    f32, bf16 = jnp.float32, jnp.bfloat16

    # ---- glue: embedding lookup + (S, B, D) layout + padding ----
    src = jnp.take(emb, input_ids, axis=0)                  # (B, S, D)
    src = jnp.transpose(src, (1, 0, 2)).astype(f32)         # (S, B, D)
    src = jnp.pad(src, ((0, Sp - S), (0, Bp - B), (0, 0)))  # (Sp, Bp, D)
    x2 = src.reshape(Sp * Bp, D).astype(bf16)               # (Sp*Bp, D)

    # ---- pad + transpose weights, gate-blocked along padded hidden dim ----
    w_ih_g = jnp.pad(w_ih.reshape(3, H, D), ((0, 0), (0, Hp - H), (0, 0)))
    w_ih_t = jnp.transpose(w_ih_g, (2, 0, 1)).reshape(D, 3 * Hp).astype(bf16)
    w_hh_g = jnp.pad(w_hh.reshape(3, H, H),
                     ((0, 0), (0, Hp - H), (0, Hp - H)))
    w_hh_t = jnp.transpose(w_hh_g, (2, 0, 1)).reshape(Hp, 3 * Hp).astype(bf16)
    b_ih_p = jnp.pad(b_ih.reshape(3, H), ((0, 0), (0, Hp - H))
                     ).reshape(1, 3 * Hp).astype(f32)
    b_hh_p = jnp.pad(b_hh.reshape(3, H), ((0, 0), (0, Hp - H))
                     ).reshape(1, 3 * Hp).astype(f32)
    w_c_t = jnp.pad(jnp.transpose(w_c), ((0, Hp - H), (0, Lp - n_label))
                    ).astype(bf16)                          # (Hp, Lp)
    b_c_p = jnp.concatenate(
        [b_c.astype(f32), jnp.full((Lp - n_label,), -1e30, f32)]
    ).reshape(1, Lp)                                        # mask pad labels

    # ---- kernel 1: hoisted input projection (parallel over time chunks) ----
    row_tile = t_chunk * Bp
    gi2 = pl.pallas_call(
        input_projection_kernel,
        out_shape=jax.ShapeDtypeStruct((Sp * Bp, 3 * Hp), f32),
        grid_spec=pltpu.PrefetchScalarGridSpec(
            num_scalar_prefetch=0,
            grid=(grid_t,),
            in_specs=[
                pl.BlockSpec((row_tile, D), lambda t: (t, 0)),
                pl.BlockSpec((D, 3 * Hp), lambda t: (0, 0)),
                pl.BlockSpec((1, 3 * Hp), lambda t: (0, 0)),
            ],
            out_specs=pl.BlockSpec((row_tile, 3 * Hp), lambda t: (t, 0)),
        ),
        compiler_params=pltpu.CompilerParams(
            dimension_semantics=("parallel",)),
    )(x2, w_ih_t, b_ih_p)
    gi = gi2.reshape(Sp, Bp, 3 * Hp)

    # ---- kernel 2: GRU recurrence (batch parallel, time arbitrary) ----
    # NOTE: for large H on v6e, raise vmem_limit_bytes here so W_hh^T plus a
    # full time chunk of gi stay resident; defaults suffice at these sizes.
    h_n = pl.pallas_call(
        functools.partial(gru_recurrent_kernel,
                          hp=Hp, t_chunk=t_chunk, seq_len=S),
        out_shape=jax.ShapeDtypeStruct((Bp, Hp), f32),
        grid_spec=pltpu.PrefetchScalarGridSpec(
            num_scalar_prefetch=0,
            grid=(grid_b, grid_t),
            in_specs=[
                pl.BlockSpec((t_chunk, bt, 3 * Hp), lambda b, t: (t, b, 0)),
                pl.BlockSpec((Hp, 3 * Hp), lambda b, t: (0, 0)),
                pl.BlockSpec((1, 3 * Hp), lambda b, t: (0, 0)),
            ],
            out_specs=pl.BlockSpec((bt, Hp), lambda b, t: (b, 0)),
        ),
        compiler_params=pltpu.CompilerParams(
            dimension_semantics=("parallel", "arbitrary")),
    )(gi, w_hh_t, b_hh_p)

    # ---- kernel 3: classifier + softmax epilogue (single block) ----
    prob_p = pl.pallas_call(
        classifier_softmax_kernel,
        out_shape=jax.ShapeDtypeStruct((Bp, Lp), f32),
    )(h_n, w_c_t, b_c_p)

    return prob_p[:B, :n_label]


def init_params(key, vocab_size, d_model, n_label):
    """Deterministic synthetic parameters (PyTorch-style uniform init)."""
    H = d_model
    ks = jax.random.split(key, 7)
    bound = 1.0 / jnp.sqrt(H)
    u = lambda k, shape, b: jax.random.uniform(k, shape, jnp.float32, -b, b)
    return {
        "embedding": jax.random.normal(ks[0], (vocab_size, d_model), jnp.float32),
        "w_ih": u(ks[1], (3 * H, d_model), bound),
        "w_hh": u(ks[2], (3 * H, H), bound),
        "b_ih": u(ks[3], (3 * H,), bound),
        "b_hh": u(ks[4], (3 * H,), bound),
        "w_c": u(ks[5], (n_label, H), bound),
        "b_c": u(ks[6], (n_label,), bound),
    }


if __name__ == "__main__":
    # Small shapes consistent with the module's forward.
    batch, seq, d_model, vocab_size, n_label = 2, 8, 32, 100, 8

    key = jax.random.PRNGKey(0)
    pkey, ikey = jax.random.split(key)
    params = init_params(pkey, vocab_size, d_model, n_label)
    input_ids = jax.random.randint(ikey, (batch, seq), 0, vocab_size, jnp.int32)

    # TODO(synk): the `labels is not None` branch (CrossEntropyLoss) is not
    # implemented; this reproduces the labels=None path (softmax probs).
    fwd = jax.jit(gru_model_forward)
    prob = fwd(input_ids, params)
    jax.block_until_ready(prob)

    assert prob.shape == (batch, n_label)
    assert bool(jnp.all(jnp.isfinite(prob)))
    # approx reciprocal in the softmax epilogue -> slightly looser tolerance
    assert bool(jnp.allclose(jnp.sum(prob, axis=-1), 1.0, atol=1e-3))
    print("KERNEL_OK")
</pallas_src>

<mosaic_0001>
module attributes {stable_mosaic.version = 11 : i64} {
  func.func @input_projection_kernel(%arg0: i32, %arg1: memref<64x32xbf16, #tpu.memory_space<vmem>>, %arg2: memref<32x384xbf16, #tpu.memory_space<vmem>>, %arg3: memref<1x384xf32, #tpu.memory_space<vmem>>, %arg4: memref<64x384xf32, #tpu.memory_space<vmem>>) attributes {dimension_semantics = [#tpu.dimension_semantics<parallel>], iteration_bounds = array<i64: 1>, scalar_prefetch = 0 : i64, scratch_operands = 0 : i64, tpu.core_type = #tpu.core_type<tc>, window_params = [{transform_indices = @transform_0, window_bounds = array<i64: 64, 32>}, {pipeline_mode = #tpu.pipeline_mode<synchronous>, transform_indices = @transform_1, window_bounds = array<i64: 32, 384>}, {pipeline_mode = #tpu.pipeline_mode<synchronous>, transform_indices = @transform_2, window_bounds = array<i64: 1, 384>}, {transform_indices = @transform_3, window_bounds = array<i64: 64, 384>}]} {
    %c0 = arith.constant 0 : index
    %c0_0 = arith.constant 0 : index
    %0 = vector.load %arg1[%c0, %c0_0] : memref<64x32xbf16, #tpu.memory_space<vmem>>, vector<64x32xbf16>
    %c0_1 = arith.constant 0 : index
    %c0_2 = arith.constant 0 : index
    %1 = vector.load %arg2[%c0_1, %c0_2] : memref<32x384xbf16, #tpu.memory_space<vmem>>, vector<32x384xbf16>
    %cst = arith.constant dense<0.000000e+00> : vector<64x384xf32>
    %2 = tpu.matmul %0, %1, %cst {dimension_numbers = #tpu.dot_dimension_numbers<[1], [0], [0], [1], [0, 0, 1, 1], [], []>} : vector<64x32xbf16>, vector<32x384xbf16>, vector<64x384xf32> -> vector<64x384xf32>
    %c0_3 = arith.constant 0 : index
    %c0_4 = arith.constant 0 : index
    %3 = vector.load %arg3[%c0_3, %c0_4] : memref<1x384xf32, #tpu.memory_space<vmem>>, vector<1x384xf32>
    %4 = vector.broadcast %3 : vector<1x384xf32> to vector<64x384xf32>
    %5 = arith.addf %2, %4 : vector<64x384xf32>
    %c0_5 = arith.constant 0 : index
    %c0_6 = arith.constant 0 : index
    %6 = vector.load %arg4[%c0_5, %c0_6] : memref<64x384xf32, #tpu.memory_space<vmem>>, vector<64x384xf32>
    tpu.vector_store %arg4[%c0_5, %c0_6], %5 {strides = array<i32>} : memref<64x384xf32, #tpu.memory_space<vmem>>, vector<64x384xf32>,
    return
  }
  func.func @transform_0(%arg0: i32) -> (i32, i32) {
    %c0_i32 = arith.constant 0 : i32
    %c0_i32_0 = arith.constant 0 : i32
    return %arg0, %c0_i32 : i32, i32
  }
  func.func @transform_1(%arg0: i32) -> (i32, i32) {
    %c0_i32 = arith.constant 0 : i32
    %c0_i32_0 = arith.constant 0 : i32
    %c0_i32_1 = arith.constant 0 : i32
    return %c0_i32, %c0_i32_0 : i32, i32
  }
  func.func @transform_2(%arg0: i32) -> (i32, i32) {
    %c0_i32 = arith.constant 0 : i32
    %c0_i32_0 = arith.constant 0 : i32
    %c0_i32_1 = arith.constant 0 : i32
    return %c0_i32, %c0_i32_0 : i32, i32
  }
  func.func @transform_3(%arg0: i32) -> (i32, i32) {
    %c0_i32 = arith.constant 0 : i32
    %c0_i32_0 = arith.constant 0 : i32
    return %arg0, %c0_i32 : i32, i32
  }
}

module attributes {stable_mosaic.version = 11 : i64} {
  func.func @gru_recurrent_kernel(%arg0: i32, %arg1: i32, %arg2: memref<8x8x384xf32, #tpu.memory_space<vmem>>, %arg3: memref<128x384xbf16, #tpu.memory_space<vmem>>, %arg4: memref<1x384xf32, #tpu.memory_space<vmem>>, %arg5: memref<8x128xf32, #tpu.memory_space<vmem>>) attributes {dimension_semantics = [#tpu.dimension_semantics<parallel>, #tpu.dimension_semantics<arbitrary>], iteration_bounds = array<i64: 1, 1>, scalar_prefetch = 0 : i64, scratch_operands = 0 : i64, tpu.core_type = #tpu.core_type<tc>, window_params = [{transform_indices = @transform_0, window_bounds = array<i64: 8, 8, 384>}, {pipeline_mode = #tpu.pipeline_mode<synchronous>, transform_indices = @transform_1, window_bounds = array<i64: 128, 384>}, {pipeline_mode = #tpu.pipeline_mode<synchronous>, transform_indices = @transform_2, window_bounds = array<i64: 1, 384>}, {transform_indices = @transform_3, window_bounds = array<i64: 8, 128>}]} {
    %c0_i32 = arith.constant 0 : i32
    %0 = arith.cmpi eq, %arg1, %c0_i32 : i32
    %1 = arith.extui %0 : i1 to i32
    %c0_i32_0 = arith.constant 0 : i32
    %2 = arith.cmpi ne, %1, %c0_i32_0 : i32
    scf.if %2 {
      %cst_56 = arith.constant 0.000000e+00 : f32
      %271 = vector.broadcast %cst_56 : f32 to vector<8x128xf32>
      %c0_57 = arith.constant 0 : index
      %c0_58 = arith.constant 0 : index
      %272 = vector.load %arg5[%c0_57, %c0_58] : memref<8x128xf32, #tpu.memory_space<vmem>>, vector<8x128xf32>
      tpu.vector_store %arg5[%c0_57, %c0_58], %271 {strides = array<i32>} : memref<8x128xf32, #tpu.memory_space<vmem>>, vector<8x128xf32>,
    } else {
    }
    %c0 = arith.constant 0 : index
    %c0_1 = arith.constant 0 : index
    %3 = vector.load %arg3[%c0, %c0_1] : memref<128x384xbf16, #tpu.memory_space<vmem>>, vector<128x384xbf16>
    %c0_2 = arith.constant 0 : index
    %c0_3 = arith.constant 0 : index
    %4 = vector.load %arg4[%c0_2, %c0_3] : memref<1x384xf32, #tpu.memory_space<vmem>>, vector<1x384xf32>
    %c0_4 = arith.constant 0 : index
    %c0_5 = arith.constant 0 : index
    %5 = vector.load %arg5[%c0_4, %c0_5] : memref<8x128xf32, #tpu.memory_space<vmem>>, vector<8x128xf32>
    %c0_i32_6 = arith.constant 0 : i32
    %6 = arith.index_cast %c0_i32_6 : i32 to index
    %c0_7 = arith.constant 0 : index
    %c0_8 = arith.constant 0 : index
    %7 = vector.load %arg2[%6, %c0_7, %c0_8] : memref<8x8x384xf32, #tpu.memory_space<vmem>>, vector<1x8x384xf32>
    %8 = vector.shape_cast %7 : vector<1x8x384xf32> to vector<8x384xf32>
    %9 = arith.truncf %5 : vector<8x128xf32> to vector<8x128xbf16>
    %cst = arith.constant dense<0.000000e+00> : vector<8x384xf32>
    %10 = tpu.matmul %9, %3, %cst {dimension_numbers = #tpu.dot_dimension_numbers<[1], [0], [0], [1], [0, 0, 1, 1], [], []>} : vector<8x128xbf16>, vector<128x384xbf16>, vector<8x384xf32> -> vector<8x384xf32>
    %11 = vector.broadcast %4 : vector<1x384xf32> to vector<8x384xf32>
    %12 = arith.addf %10, %11 : vector<8x384xf32>
    %13 = vector.extract_strided_slice %8 {offsets = [0, 0], sizes = [8, 128], strides = [1, 1]} : vector<8x384xf32> to vector<8x128xf32>
    %14 = vector.extract_strided_slice %8 {offsets = [0, 128], sizes = [8, 128], strides = [1, 1]} : vector<8x384xf32> to vector<8x128xf32>
    %15 = vector.extract_strided_slice %8 {offsets = [0, 256], sizes = [8, 128], strides = [1, 1]} : vector<8x384xf32> to vector<8x128xf32>
    %16 = vector.extract_strided_slice %12 {offsets = [0, 0], sizes = [8, 128], strides = [1, 1]} : vector<8x384xf32> to vector<8x128xf32>
    %17 = vector.extract_strided_slice %12 {offsets = [0, 128], sizes = [8, 128], strides = [1, 1]} : vector<8x384xf32> to vector<8x128xf32>
    %18 = vector.extract_strided_slice %12 {offsets = [0, 256], sizes = [8, 128], strides = [1, 1]} : vector<8x384xf32> to vector<8x128xf32>
    %19 = arith.addf %13, %16 : vector<8x128xf32>
    %20 = arith.negf %19 : vector<8x128xf32>
    %21 = math.exp %20 : vector<8x128xf32>
    %cst_9 = arith.constant 1.000000e+00 : f32
    %22 = vector.broadcast %cst_9 : f32 to vector<8x128xf32>
    %23 = arith.addf %22, %21 : vector<8x128xf32>
    %24 = arith.divf %22, %23 : vector<8x128xf32>
    %25 = arith.addf %14, %17 : vector<8x128xf32>
    %26 = arith.negf %25 : vector<8x128xf32>
    %27 = math.exp %26 : vector<8x128xf32>
    %cst_10 = arith.constant 1.000000e+00 : f32
    %28 = vector.broadcast %cst_10 : f32 to vector<8x128xf32>
    %29 = arith.addf %28, %27 : vector<8x128xf32>
    %30 = arith.divf %28, %29 : vector<8x128xf32>
    %31 = arith.mulf %24, %18 : vector<8x128xf32>
    %32 = arith.addf %15, %31 : vector<8x128xf32>
    %33 = math.tanh %32 : vector<8x128xf32>
    %cst_11 = arith.constant 1.000000e+00 : f32
    %34 = vector.broadcast %cst_11 : f32 to vector<8x128xf32>
    %35 = arith.subf %34, %30 : vector<8x128xf32>
    %36 = arith.mulf %35, %33 : vector<8x128xf32>
    %37 = arith.mulf %30, %5 : vector<8x128xf32>
    %38 = arith.addf %36, %37 : vector<8x128xf32>
    %c1_i32 = arith.constant 1 : i32
    %39 = arith.index_cast %c1_i32 : i32 to index
    %c0_12 = arith.constant 0 : index
    %c0_13 = arith.constant 0 : index
    %40 = vector.load %arg2[%39, %c0_12, %c0_13] : memref<8x8x384xf32, #tpu.memory_space<vmem>>, vector<1x8x384xf32>
    %41 = vector.shape_cast %40 : vector<1x8x384xf32> to vector<8x384xf32>
    %42 = arith.truncf %38 : vector<8x128xf32> to vector<8x128xbf16>
    %cst_14 = arith.constant dense<0.000000e+00> : vector<8x384xf32>
    %43 = tpu.matmul %42, %3, %cst_14 {dimension_numbers = #tpu.dot_dimension_numbers<[1], [0], [0], [1], [0, 0, 1, 1], [], []>} : vector<8x128xbf16>, vector<128x384xbf16>, vector<8x384xf32> -> vector<8x384xf32>
    %44 = vector.broadcast %4 : vector<1x384xf32> to vector<8x384xf32>
    %45 = arith.addf %43, %44 : vector<8x384xf32>
    %46 = vector.extract_strided_slice %41 {offsets = [0, 0], sizes = [8, 128], strides = [1, 1]} : vector<8x384xf32> to vector<8x128xf32>
    %47 = vector.extract_strided_slice %41 {offsets = [0, 128], sizes = [8, 128], strides = [1, 1]} : vector<8x384xf32> to vector<8x128xf32>
    %48 = vector.extract_strided_slice %41 {offsets = [0, 256], sizes = [8, 128], strides = [1, 1]} : vector<8x384xf32> to vector<8x128xf32>
    %49 = vector.extract_strided_slice %45 {offsets = [0, 0], sizes = [8, 128], strides = [1, 1]} : vector<8x384xf32> to vector<8x128xf32>
    %50 = vector.extract_strided_slice %45 {offsets = [0, 128], sizes = [8, 128], strides = [1, 1]} : vector<8x384xf32> to vector<8x128xf32>
    %51 = vector.extract_strided_slice %45 {offsets = [0, 256], sizes = [8, 128], strides = [1, 1]} : vector<8x384xf32> to vector<8x128xf32>
    %52 = arith.addf %46, %49 : vector<8x128xf32>
    %53 = arith.negf %52 : vector<8x128xf32>
    %54 = math.exp %53 : vector<8x128xf32>
    %cst_15 = arith.constant 1.000000e+00 : f32
    %55 = vector.broadcast %cst_15 : f32 to vector<8x128xf32>
    %56 = arith.addf %55, %54 : vector<8x128xf32>
    %57 = arith.divf %55, %56 : vector<8x128xf32>
    %58 = arith.addf %47, %50 : vector<8x128xf32>
    %59 = arith.negf %58 : vector<8x128xf32>
    %60 = math.exp %59 : vector<8x128xf32>
    %cst_16 = arith.constant 1.000000e+00 : f32
    %61 = vector.broadcast %cst_16 : f32 to vector<8x128xf32>
    %62 = arith.addf %61, %60 : vector<8x128xf32>
    %63 = arith.divf %61, %62 : vector<8x128xf32>
    %64 = arith.mulf %57, %51 : vector<8x128xf32>
    %65 = arith.addf %48, %64 : vector<8x128xf32>
    %66 = math.tanh %65 : vector<8x128xf32>
    %cst_17 = arith.constant 1.000000e+00 : f32
    %67 = vector.broadcast %cst_17 : f32 to vector<8x128xf32>
    %68 = arith.subf %67, %63 : vector<8x128xf32>
    %69 = arith.mulf %68, %66 : vector<8x128xf32>
    %70 = arith.mulf %63, %38 : vector<8x128xf32>
    %71 = arith.addf %69, %70 : vector<8x128xf32>
    %c2_i32 = arith.constant 2 : i32
    %72 = arith.index_cast %c2_i32 : i32 to index
    %c0_18 = arith.constant 0 : index
    %c0_19 = arith.constant 0 : index
    %73 = vector.load %arg2[%72, %c0_18, %c0_19] : memref<8x8x384xf32, #tpu.memory_space<vmem>>, vector<1x8x384xf32>
    %74 = vector.shape_cast %73 : vector<1x8x384xf32> to vector<8x384xf32>
    %75 = arith.truncf %71 : vector<8x128xf32> to vector<8x128xbf16>
    %cst_20 = arith.constant dense<0.000000e+00> : vector<8x384xf32>
    %76 = tpu.matmul %75, %3, %cst_20 {dimension_numbers = #tpu.dot_dimension_numbers<[1], [0], [0], [1], [0, 0, 1, 1], [], []>} : vector<8x128xbf16>, vector<128x384xbf16>, vector<8x384xf32> -> vector<8x384xf32>
    %77 = vector.broadcast %4 : vector<1x384xf32> to vector<8x384xf32>
    %78 = arith.addf %76, %77 : vector<8x384xf32>
    %79 = vector.extract_strided_slice %74 {offsets = [0, 0], sizes = [8, 128], strides = [1, 1]} : vector<8x384xf32> to vector<8x128xf32>
    %80 = vector.extract_strided_slice %74 {offsets = [0, 128], sizes = [8, 128], strides = [1, 1]} : vector<8x384xf32> to vector<8x128xf32>
    %81 = vector.extract_strided_slice %74 {offsets = [0, 256], sizes = [8, 128], strides = [1, 1]} : vector<8x384xf32> to vector<8x128xf32>
    %82 = vector.extract_strided_slice %78 {offsets = [0, 0], sizes = [8, 128], strides = [1, 1]} : vector<8x384xf32> to vector<8x128xf32>
    %83 = vector.extract_strided_slice %78 {offsets = [0, 128], sizes = [8, 128], strides = [1, 1]} : vector<8x384xf32> to vector<8x128xf32>
    %84 = vector.extract_strided_slice %78 {offsets = [0, 256], sizes = [8, 128], strides = [1, 1]} : vector<8x384xf32> to vector<8x128xf32>
    %85 = arith.addf %79, %82 : vector<8x128xf32>
    %86 = arith.negf %85 : vector<8x128xf32>
    %87 = math.exp %86 : vector<8x128xf32>
    %cst_21 = arith.constant 1.000000e+00 : f32
    %88 = vector.broadcast %cst_21 : f32 to vector<8x128xf32>
    %89 = arith.addf %88, %87 : vector<8x128xf32>
    %90 = arith.divf %88, %89 : vector<8x128xf32>
    %91 = arith.addf %80, %83 : vector<8x128xf32>
    %92 = arith.negf %91 : vector<8x128xf32>
    %93 = math.exp %92 : vector<8x128xf32>
    %cst_22 = arith.constant 1.000000e+00 : f32
    %94 = vector.broadcast %cst_22 : f32 to vector<8x128xf32>
    %95 = arith.addf %94, %93 : vector<8x128xf32>
    %96 = arith.divf %94, %95 : vector<8x128xf32>
    %97 = arith.mulf %90, %84 : vector<8x128xf32>
    %98 = arith.addf %81, %97 : vector<8x128xf32>
    %99 = math.tanh %98 : vector<8x128xf32>
    %cst_23 = arith.constant 1.000000e+00 : f32
    %100 = vector.broadcast %cst_23 : f32 to vector<8x128xf32>
    %101 = arith.subf %100, %96 : vector<8x128xf32>
    %102 = arith.mulf %101, %99 : vector<8x128xf32>
    %103 = arith.mulf %96, %71 : vector<8x128xf32>
    %104 = arith.addf %102, %103 : vector<8x128xf32>
    %c3_i32 = arith.constant 3 : i32
    %105 = arith.index_cast %c3_i32 : i32 to index
    %c0_24 = arith.constant 0 : index
    %c0_25 = arith.constant 0 : index
    %106 = vector.load %arg2[%105, %c0_24, %c0_25] : memref<8x8x384xf32, #tpu.memory_space<vmem>>, vector<1x8x384xf32>
    %107 = vector.shape_cast %106 : vector<1x8x384xf32> to vector<8x384xf32>
    %108 = arith.truncf %104 : vector<8x128xf32> to vector<8x128xbf16>
    %cst_26 = arith.constant dense<0.000000e+00> : vector<8x384xf32>
    %109 = tpu.matmul %108, %3, %cst_26 {dimension_numbers = #tpu.dot_dimension_numbers<[1], [0], [0], [1], [0, 0, 1, 1], [], []>} : vector<8x128xbf16>, vector<128x384xbf16>, vector<8x384xf32> -> vector<8x384xf32>
    %110 = vector.broadcast %4 : vector<1x384xf32> to vector<8x384xf32>
    %111 = arith.addf %109, %110 : vector<8x384xf32>
    %112 = vector.extract_strided_slice %107 {offsets = [0, 0], sizes = [8, 128], strides = [1, 1]} : vector<8x384xf32> to vector<8x128xf32>
    %113 = vector.extract_strided_slice %107 {offsets = [0, 128], sizes = [8, 128], strides = [1, 1]} : vector<8x384xf32> to vector<8x128xf32>
    %114 = vector.extract_strided_slice %107 {offsets = [0, 256], sizes = [8, 128], strides = [1, 1]} : vector<8x384xf32> to vector<8x128xf32>
    %115 = vector.extract_strided_slice %111 {offsets = [0, 0], sizes = [8, 128], strides = [1, 1]} : vector<8x384xf32> to vector<8x128xf32>
    %116 = vector.extract_strided_slice %111 {offsets = [0, 128], sizes = [8, 128], strides = [1, 1]} : vector<8x384xf32> to vector<8x128xf32>
    %117 = vector.extract_strided_slice %111 {offsets = [0, 256], sizes = [8, 128], strides = [1, 1]} : vector<8x384xf32> to vector<8x128xf32>
    %118 = arith.addf %112, %115 : vector<8x128xf32>
    %119 = arith.negf %118 : vector<8x128xf32>
    %120 = math.exp %119 : vector<8x128xf32>
    %cst_27 = arith.constant 1.000000e+00 : f32
    %121 = vector.broadcast %cst_27 : f32 to vector<8x128xf32>
    %122 = arith.addf %121, %120 : vector<8x128xf32>
    %123 = arith.divf %121, %122 : vector<8x128xf32>
    %124 = arith.addf %113, %116 : vector<8x128xf32>
    %125 = arith.negf %124 : vector<8x128xf32>
    %126 = math.exp %125 : vector<8x128xf32>
    %cst_28 = arith.constant 1.000000e+00 : f32
    %127 = vector.broadcast %cst_28 : f32 to vector<8x128xf32>
    %128 = arith.addf %127, %126 : vector<8x128xf32>
    %129 = arith.divf %127, %128 : vector<8x128xf32>
    %130 = arith.mulf %123, %117 : vector<8x128xf32>
    %131 = arith.addf %114, %130 : vector<8x128xf32>
    %132 = math.tanh %131 : vector<8x128xf32>
    %cst_29 = arith.constant 1.000000e+00 : f32
    %133 = vector.broadcast %cst_29 : f32 to vector<8x128xf32>
    %134 = arith.subf %133, %129 : vector<8x128xf32>
    %135 = arith.mulf %134, %132 : vector<8x128xf32>
    %136 = arith.mulf %129, %104 : vector<8x128xf32>
    %137 = arith.addf %135, %136 : vector<8x128xf32>
    %c4_i32 = arith.constant 4 : i32
    %138 = arith.index_cast %c4_i32 : i32 to index
    %c0_30 = arith.constant 0 : index
    %c0_31 = arith.constant 0 : index
    %139 = vector.load %arg2[%138, %c0_30, %c0_31] : memref<8x8x384xf32, #tpu.memory_space<vmem>>, vector<1x8x384xf32>
    %140 = vector.shape_cast %139 : vector<1x8x384xf32> to vector<8x384xf32>
    %141 = arith.truncf %137 : vector<8x128xf32> to vector<8x128xbf16>
    %cst_32 = arith.constant dense<0.000000e+00> : vector<8x384xf32>
    %142 = tpu.matmul %141, %3, %cst_32 {dimension_numbers = #tpu.dot_dimension_numbers<[1], [0], [0], [1], [0, 0, 1, 1], [], []>} : vector<8x128xbf16>, vector<128x384xbf16>, vector<8x384xf32> -> vector<8x384xf32>
    %143 = vector.broadcast %4 : vector<1x384xf32> to vector<8x384xf32>
    %144 = arith.addf %142, %143 : vector<8x384xf32>
    %145 = vector.extract_strided_slice %140 {offsets = [0, 0], sizes = [8, 128], strides = [1, 1]} : vector<8x384xf32> to vector<8x128xf32>
    %146 = vector.extract_strided_slice %140 {offsets = [0, 128], sizes = [8, 128], strides = [1, 1]} : vector<8x384xf32> to vector<8x128xf32>
    %147 = vector.extract_strided_slice %140 {offsets = [0, 256], sizes = [8, 128], strides = [1, 1]} : vector<8x384xf32> to vector<8x128xf32>
    %148 = vector.extract_strided_slice %144 {offsets = [0, 0], sizes = [8, 128], strides = [1, 1]} : vector<8x384xf32> to vector<8x128xf32>
    %149 = vector.extract_strided_slice %144 {offsets = [0, 128], sizes = [8, 128], strides = [1, 1]} : vector<8x384xf32> to vector<8x128xf32>
    %150 = vector.extract_strided_slice %144 {offsets = [0, 256], sizes = [8, 128], strides = [1, 1]} : vector<8x384xf32> to vector<8x128xf32>
    %151 = arith.addf %145, %148 : vector<8x128xf32>
    %152 = arith.negf %151 : vector<8x128xf32>
    %153 = math.exp %152 : vector<8x128xf32>
    %cst_33 = arith.constant 1.000000e+00 : f32
    %154 = vector.broadcast %cst_33 : f32 to vector<8x128xf32>
    %155 = arith.addf %154, %153 : vector<8x128xf32>
    %156 = arith.divf %154, %155 : vector<8x128xf32>
    %157 = arith.addf %146, %149 : vector<8x128xf32>
    %158 = arith.negf %157 : vector<8x128xf32>
    %159 = math.exp %158 : vector<8x128xf32>
    %cst_34 = arith.constant 1.000000e+00 : f32
    %160 = vector.broadcast %cst_34 : f32 to vector<8x128xf32>
    %161 = arith.addf %160, %159 : vector<8x128xf32>
    %162 = arith.divf %160, %161 : vector<8x128xf32>
    %163 = arith.mulf %156, %150 : vector<8x128xf32>
    %164 = arith.addf %147, %163 : vector<8x128xf32>
    %165 = math.tanh %164 : vector<8x128xf32>
    %cst_35 = arith.constant 1.000000e+00 : f32
    %166 = vector.broadcast %cst_35 : f32 to vector<8x128xf32>
    %167 = arith.subf %166, %162 : vector<8x128xf32>
    %168 = arith.mulf %167, %165 : vector<8x128xf32>
    %169 = arith.mulf %162, %137 : vector<8x128xf32>
    %170 = arith.addf %168, %169 : vector<8x128xf32>
    %c5_i32 = arith.constant 5 : i32
    %171 = arith.index_cast %c5_i32 : i32 to index
    %c0_36 = arith.constant 0 : index
    %c0_37 = arith.constant 0 : index
    %172 = vector.load %arg2[%171, %c0_36, %c0_37] : memref<8x8x384xf32, #tpu.memory_space<vmem>>, vector<1x8x384xf32>
    %173 = vector.shape_cast %172 : vector<1x8x384xf32> to vector<8x384xf32>
    %174 = arith.truncf %170 : vector<8x128xf32> to vector<8x128xbf16>
    %cst_38 = arith.constant dense<0.000000e+00> : vector<8x384xf32>
    %175 = tpu.matmul %174, %3, %cst_38 {dimension_numbers = #tpu.dot_dimension_numbers<[1], [0], [0], [1], [0, 0, 1, 1], [], []>} : vector<8x128xbf16>, vector<128x384xbf16>, vector<8x384xf32> -> vector<8x384xf32>
    %176 = vector.broadcast %4 : vector<1x384xf32> to vector<8x384xf32>
    %177 = arith.addf %175, %176 : vector<8x384xf32>
    %178 = vector.extract_strided_slice %173 {offsets = [0, 0], sizes = [8, 128], strides = [1, 1]} : vector<8x384xf32> to vector<8x128xf32>
    %179 = vector.extract_strided_slice %173 {offsets = [0, 128], sizes = [8, 128], strides = [1, 1]} : vector<8x384xf32> to vector<8x128xf32>
    %180 = vector.extract_strided_slice %173 {offsets = [0, 256], sizes = [8, 128], strides = [1, 1]} : vector<8x384xf32> to vector<8x128xf32>
    %181 = vector.extract_strided_slice %177 {offsets = [0, 0], sizes = [8, 128], strides = [1, 1]} : vector<8x384xf32> to vector<8x128xf32>
    %182 = vector.extract_strided_slice %177 {offsets = [0, 128], sizes = [8, 128], strides = [1, 1]} : vector<8x384xf32> to vector<8x128xf32>
    %183 = vector.extract_strided_slice %177 {offsets = [0, 256], sizes = [8, 128], strides = [1, 1]} : vector<8x384xf32> to vector<8x128xf32>
    %184 = arith.addf %178, %181 : vector<8x128xf32>
    %185 = arith.negf %184 : vector<8x128xf32>
    %186 = math.exp %185 : vector<8x128xf32>
    %cst_39 = arith.constant 1.000000e+00 : f32
    %187 = vector.broadcast %cst_39 : f32 to vector<8x128xf32>
    %188 = arith.addf %187, %186 : vector<8x128xf32>
    %189 = arith.divf %187, %188 : vector<8x128xf32>
    %190 = arith.addf %179, %182 : vector<8x128xf32>
    %191 = arith.negf %190 : vector<8x128xf32>
    %192 = math.exp %191 : vector<8x128xf32>
    %cst_40 = arith.constant 1.000000e+00 : f32
    %193 = vector.broadcast %cst_40 : f32 to vector<8x128xf32>
    %194 = arith.addf %193, %192 : vector<8x128xf32>
    %195 = arith.divf %193, %194 : vector<8x128xf32>
    %196 = arith.mulf %189, %183 : vector<8x128xf32>
    %197 = arith.addf %180, %196 : vector<8x128xf32>
    %198 = math.tanh %197 : vector<8x128xf32>
    %cst_41 = arith.constant 1.000000e+00 : f32
    %199 = vector.broadcast %cst_41 : f32 to vector<8x128xf32>
    %200 = arith.subf %199, %195 : vector<8x128xf32>
    %201 = arith.mulf %200, %198 : vector<8x128xf32>
    %202 = arith.mulf %195, %170 : vector<8x128xf32>
    %203 = arith.addf %201, %202 : vector<8x128xf32>
    %c6_i32 = arith.constant 6 : i32
    %204 = arith.index_cast %c6_i32 : i32 to index
    %c0_42 = arith.constant 0 : index
    %c0_43 = arith.constant 0 : index
    %205 = vector.load %arg2[%204, %c0_42, %c0_43] : memref<8x8x384xf32, #tpu.memory_space<vmem>>, vector<1x8x384xf32>
    %206 = vector.shape_cast %205 : vector<1x8x384xf32> to vector<8x384xf32>
    %207 = arith.truncf %203 : vector<8x128xf32> to vector<8x128xbf16>
    %cst_44 = arith.constant dense<0.000000e+00> : vector<8x384xf32>
    %208 = tpu.matmul %207, %3, %cst_44 {dimension_numbers = #tpu.dot_dimension_numbers<[1], [0], [0], [1], [0, 0, 1, 1], [], []>} : vector<8x128xbf16>, vector<128x384xbf16>, vector<8x384xf32> -> vector<8x384xf32>
    %209 = vector.broadcast %4 : vector<1x384xf32> to vector<8x384xf32>
    %210 = arith.addf %208, %209 : vector<8x384xf32>
    %211 = vector.extract_strided_slice %206 {offsets = [0, 0], sizes = [8, 128], strides = [1, 1]} : vector<8x384xf32> to vector<8x128xf32>
    %212 = vector.extract_strided_slice %206 {offsets = [0, 128], sizes = [8, 128], strides = [1, 1]} : vector<8x384xf32> to vector<8x128xf32>
    %213 = vector.extract_strided_slice %206 {offsets = [0, 256], sizes = [8, 128], strides = [1, 1]} : vector<8x384xf32> to vector<8x128xf32>
    %214 = vector.extract_strided_slice %210 {offsets = [0, 0], sizes = [8, 128], strides = [1, 1]} : vector<8x384xf32> to vector<8x128xf32>
    %215 = vector.extract_strided_slice %210 {offsets = [0, 128], sizes = [8, 128], strides = [1, 1]} : vector<8x384xf32> to vector<8x128xf32>
    %216 = vector.extract_strided_slice %210 {offsets = [0, 256], sizes = [8, 128], strides = [1, 1]} : vector<8x384xf32> to vector<8x128xf32>
    %217 = arith.addf %211, %214 : vector<8x128xf32>
    %218 = arith.negf %217 : vector<8x128xf32>
    %219 = math.exp %218 : vector<8x128xf32>
    %cst_45 = arith.constant 1.000000e+00 : f32
    %220 = vector.broadcast %cst_45 : f32 to vector<8x128xf32>
    %221 = arith.addf %220, %219 : vector<8x128xf32>
    %222 = arith.divf %220, %221 : vector<8x128xf32>
    %223 = arith.addf %212, %215 : vector<8x128xf32>
    %224 = arith.negf %223 : vector<8x128xf32>
    %225 = math.exp %224 : vector<8x128xf32>
    %cst_46 = arith.constant 1.000000e+00 : f32
    %226 = vector.broadcast %cst_46 : f32 to vector<8x128xf32>
    %227 = arith.addf %226, %225 : vector<8x128xf32>
    %228 = arith.divf %226, %227 : vector<8x128xf32>
    %229 = arith.mulf %222, %216 : vector<8x128xf32>
    %230 = arith.addf %213, %229 : vector<8x128xf32>
    %231 = math.tanh %230 : vector<8x128xf32>
    %cst_47 = arith.constant 1.000000e+00 : f32
    %232 = vector.broadcast %cst_47 : f32 to vector<8x128xf32>
    %233 = arith.subf %232, %228 : vector<8x128xf32>
    %234 = arith.mulf %233, %231 : vector<8x128xf32>
    %235 = arith.mulf %228, %203 : vector<8x128xf32>
    %236 = arith.addf %234, %235 : vector<8x128xf32>
    %c7_i32 = arith.constant 7 : i32
    %237 = arith.index_cast %c7_i32 : i32 to index
    %c0_48 = arith.constant 0 : index
    %c0_49 = arith.constant 0 : index
    %238 = vector.load %arg2[%237, %c0_48, %c0_49] : memref<8x8x384xf32, #tpu.memory_space<vmem>>, vector<1x8x384xf32>
    %239 = vector.shape_cast %238 : vector<1x8x384xf32> to vector<8x384xf32>
    %240 = arith.truncf %236 : vector<8x128xf32> to vector<8x128xbf16>
    %cst_50 = arith.constant dense<0.000000e+00> : vector<8x384xf32>
    %241 = tpu.matmul %240, %3, %cst_50 {dimension_numbers = #tpu.dot_dimension_numbers<[1], [0], [0], [1], [0, 0, 1, 1], [], []>} : vector<8x128xbf16>, vector<128x384xbf16>, vector<8x384xf32> -> vector<8x384xf32>
    %242 = vector.broadcast %4 : vector<1x384xf32> to vector<8x384xf32>
    %243 = arith.addf %241, %242 : vector<8x384xf32>
    %244 = vector.extract_strided_slice %239 {offsets = [0, 0], sizes = [8, 128], strides = [1, 1]} : vector<8x384xf32> to vector<8x128xf32>
    %245 = vector.extract_strided_slice %239 {offsets = [0, 128], sizes = [8, 128], strides = [1, 1]} : vector<8x384xf32> to vector<8x128xf32>
    %246 = vector.extract_strided_slice %239 {offsets = [0, 256], sizes = [8, 128], strides = [1, 1]} : vector<8x384xf32> to vector<8x128xf32>
    %247 = vector.extract_strided_slice %243 {offsets = [0, 0], sizes = [8, 128], strides = [1, 1]} : vector<8x384xf32> to vector<8x128xf32>
    %248 = vector.extract_strided_slice %243 {offsets = [0, 128], sizes = [8, 128], strides = [1, 1]} : vector<8x384xf32> to vector<8x128xf32>
    %249 = vector.extract_strided_slice %243 {offsets = [0, 256], sizes = [8, 128], strides = [1, 1]} : vector<8x384xf32> to vector<8x128xf32>
    %250 = arith.addf %244, %247 : vector<8x128xf32>
    %251 = arith.negf %250 : vector<8x128xf32>
    %252 = math.exp %251 : vector<8x128xf32>
    %cst_51 = arith.constant 1.000000e+00 : f32
    %253 = vector.broadcast %cst_51 : f32 to vector<8x128xf32>
    %254 = arith.addf %253, %252 : vector<8x128xf32>
    %255 = arith.divf %253, %254 : vector<8x128xf32>
    %256 = arith.addf %245, %248 : vector<8x128xf32>
    %257 = arith.negf %256 : vector<8x128xf32>
    %258 = math.exp %257 : vector<8x128xf32>
    %cst_52 = arith.constant 1.000000e+00 : f32
    %259 = vector.broadcast %cst_52 : f32 to vector<8x128xf32>
    %260 = arith.addf %259, %258 : vector<8x128xf32>
    %261 = arith.divf %259, %260 : vector<8x128xf32>
    %262 = arith.mulf %255, %249 : vector<8x128xf32>
    %263 = arith.addf %246, %262 : vector<8x128xf32>
    %264 = math.tanh %263 : vector<8x128xf32>
    %cst_53 = arith.constant 1.000000e+00 : f32
    %265 = vector.broadcast %cst_53 : f32 to vector<8x128xf32>
    %266 = arith.subf %265, %261 : vector<8x128xf32>
    %267 = arith.mulf %266, %264 : vector<8x128xf32>
    %268 = arith.mulf %261, %236 : vector<8x128xf32>
    %269 = arith.addf %267, %268 : vector<8x128xf32>
    %c8_i32 = arith.constant 8 : i32
    %c0_54 = arith.constant 0 : index
    %c0_55 = arith.constant 0 : index
    %270 = vector.load %arg5[%c0_54, %c0_55] : memref<8x128xf32, #tpu.memory_space<vmem>>, vector<8x128xf32>
    tpu.vector_store %arg5[%c0_54, %c0_55], %269 {strides = array<i32>} : memref<8x128xf32, #tpu.memory_space<vmem>>, vector<8x128xf32>,
    return
  }
  func.func @transform_0(%arg0: i32, %arg1: i32) -> (i32, i32, i32) {
    %c0_i32 = arith.constant 0 : i32
    %c0_i32_0 = arith.constant 0 : i32
    return %arg1, %arg0, %c0_i32 : i32, i32, i32
  }
  func.func @transform_1(%arg0: i32, %arg1: i32) -> (i32, i32) {
    %c0_i32 = arith.constant 0 : i32
    %c0_i32_0 = arith.constant 0 : i32
    %c0_i32_1 = arith.constant 0 : i32
    return %c0_i32, %c0_i32_0 : i32, i32
  }
  func.func @transform_2(%arg0: i32, %arg1: i32) -> (i32, i32) {
    %c0_i32 = arith.constant 0 : i32
    %c0_i32_0 = arith.constant 0 : i32
    %c0_i32_1 = arith.constant 0 : i32
    return %c0_i32, %c0_i32_0 : i32, i32
  }
  func.func @transform_3(%arg0: i32, %arg1: i32) -> (i32, i32) {
    %c0_i32 = arith.constant 0 : i32
    %c0_i32_0 = arith.constant 0 : i32
    return %arg0, %c0_i32 : i32, i32
  }
}

module attributes {stable_mosaic.version = 11 : i64} {
  func.func @classifier_softmax_kernel(%arg0: memref<8x128xf32, #tpu.memory_space<vmem>>, %arg1: memref<128x128xbf16, #tpu.memory_space<vmem>>, %arg2: memref<1x128xf32, #tpu.memory_space<vmem>>, %arg3: memref<8x128xf32, #tpu.memory_space<vmem>>) attributes {dimension_semantics = [], scalar_prefetch = 0 : i64, scratch_operands = 0 : i64, tpu.core_type = #tpu.core_type<tc>} {
    %c0 = arith.constant 0 : index
    %c0_0 = arith.constant 0 : index
    %0 = vector.load %arg0[%c0, %c0_0] : memref<8x128xf32, #tpu.memory_space<vmem>>, vector<8x128xf32>
    %1 = arith.truncf %0 : vector<8x128xf32> to vector<8x128xbf16>
    %c0_1 = arith.constant 0 : index
    %c0_2 = arith.constant 0 : index
    %2 = vector.load %arg1[%c0_1, %c0_2] : memref<128x128xbf16, #tpu.memory_space<vmem>>, vector<128x128xbf16>
    %cst = arith.constant dense<0.000000e+00> : vector<8x128xf32>
    %3 = tpu.matmul %1, %2, %cst {dimension_numbers = #tpu.dot_dimension_numbers<[1], [0], [0], [1], [0, 0, 1, 1], [], []>} : vector<8x128xbf16>, vector<128x128xbf16>, vector<8x128xf32> -> vector<8x128xf32>
    %c0_3 = arith.constant 0 : index
    %c0_4 = arith.constant 0 : index
    %4 = vector.load %arg2[%c0_3, %c0_4] : memref<1x128xf32, #tpu.memory_space<vmem>>, vector<1x128xf32>
    %5 = vector.broadcast %4 : vector<1x128xf32> to vector<8x128xf32>
    %6 = arith.addf %3, %5 : vector<8x128xf32>
    %cst_5 = arith.constant dense<0xFF800000> : vector<8xf32>
    %7 = vector.multi_reduction <maximumf>, %6, %cst_5 [1] : vector<8x128xf32> to vector<8xf32>
    %8 = vector.shape_cast %7 : vector<8xf32> to vector<8x1xf32>
    %9 = vector.broadcast %8 : vector<8x1xf32> to vector<8x128xf32>
    %10 = arith.subf %6, %9 : vector<8x128xf32>
    %11 = math.exp %10 : vector<8x128xf32>
    %cst_6 = arith.constant dense<0.000000e+00> : vector<8xf32>
    %12 = vector.multi_reduction <add>, %11, %cst_6 [1] : vector<8x128xf32> to vector<8xf32>
    %13 = vector.shape_cast %12 : vector<8xf32> to vector<8x1xf32>
    %14 = tpu.reciprocal %13 {approx = true} : vector<8x1xf32> -> vector<8x1xf32>
    %15 = vector.broadcast %14 : vector<8x1xf32> to vector<8x128xf32>
    %16 = arith.mulf %11, %15 : vector<8x128xf32>
    %c0_7 = arith.constant 0 : index
    %c0_8 = arith.constant 0 : index
    %17 = vector.load %arg3[%c0_7, %c0_8] : memref<8x128xf32, #tpu.memory_space<vmem>>, vector<8x128xf32>
    tpu.vector_store %arg3[%c0_7, %c0_8], %16 {strides = array<i32>} : memref<8x128xf32, #tpu.memory_space<vmem>>, vector<8x128xf32>,
    return
  }
}

</mosaic_0001>

<llo_original>
// kernel: gru_model_forward.5
$region0: #{gru_model_forward.5}
  #allocation0 [shape = 'u32[]', space=smem, size = 0x4, offset = 0x4, fixed_abs, tag = 'smem constant byte address 0x4 - core index']
  #allocation1 [shape = 'u32[144,128]{1,0:T(1,128)}', space=vmem, size = 0x12000, scoped, tag = 'internal scratch']
  %s0 = inlined_call_operand.vmem [shape: f32[8,128], index: 0, kind: input, shape index: {}]
  %s1 = inlined_call_operand.vmem [shape: bf16[128,128], index: 1, kind: input, shape index: {}]
  %s2 = inlined_call_operand.vmem [shape: f32[1,128], index: 2, kind: input, shape index: {}]
  %s3 = inlined_call_operand.vmem [shape: f32[8,128], index: 3, kind: output, shape index: {}]
  %s4 = sld [smem:[#allocation0]]
  $region22: #{gru_model_forward.5} parent=0
    _
  %s6 = ssub.s32 1, %s4
  %s7 = scalar_select 0, %s6, %s4
  // Predicated region
  $region2: #{gru_model_forward.5} parent=0 // pred_check
    _
  $region3: #{gru_model_forward.5} parent=0 // pred_check_branch
    %9 = sbr.rel (0) target = $region5
  $region4: #{gru_model_forward.5} parent=0 // pred_region
    _
  $region5: #{gru_model_forward.5} parent=0 // pred_fallthru
    _
  // Predicated region
  $region6: #{gru_model_forward.5} parent=0 // pred_check
    _
  $region7: #{gru_model_forward.5} parent=0 // pred_check_branch
    %11 = sbr.rel (0) target = $region9
  $region8: #{gru_model_forward.5} parent=0 // pred_region
    _
  $region9: #{gru_model_forward.5} parent=0 // pred_fallthru
    _
  // Predicated region
  $region10: #{gru_model_forward.5} parent=0 // pred_check
    _
  $region11: #{gru_model_forward.5} parent=0 // pred_check_branch
    %13 = sbr.rel (0) target = $region13
  $region12: #{gru_model_forward.5} parent=0 // pred_region
    _
  $region13: #{gru_model_forward.5} parent=0 // pred_fallthru
    _
  %v15 = vld [vmem:[%s0] sm:$0xff]
  %v16 = vpack.c.bf16 %v15, %v15
  %v17 = vld [vmem:[%s1] sm:$0xf]
  %v18 = vld [vmem:[%s1 + $0x4] sm:$0xf]
  %v19 = vld [vmem:[%s1 + $0x8] sm:$0xf]
  %v20 = vld [vmem:[%s1 + $0xc] sm:$0xf]
  %v21 = vld [vmem:[%s1 + $0x10] sm:$0xf]
  %v22 = vld [vmem:[%s1 + $0x14] sm:$0xf]
  %v23 = vld [vmem:[%s1 + $0x18] sm:$0xf]
  %v24 = vld [vmem:[%s1 + $0x1c] sm:$0xf]
  %v25 = vld [vmem:[%s1 + $0x20] sm:$0xf]
  %v26 = vld [vmem:[%s1 + $0x24] sm:$0xf]
  %v27 = vld [vmem:[%s1 + $0x28] sm:$0xf]
  %v28 = vld [vmem:[%s1 + $0x2c] sm:$0xf]
  %v29 = vld [vmem:[%s1 + $0x30] sm:$0xf]
  %v30 = vld [vmem:[%s1 + $0x34] sm:$0xf]
  %v31 = vld [vmem:[%s1 + $0x38] sm:$0xf]
  %v32 = vld [vmem:[%s1 + $0x3c] sm:$0xf]
  %v33 = vld [vmem:[%s2] sm:$0x1]
  %v35 = vlaneseq
  %v36 = vshrl.u32 %v35, 7
  %v37 = vsub.s32 0, %v36
  %v38 = vrot.slane %v33, %v37
  %v56 = vunpack.c.l.b16 %v17
  %v57 = vunpack.c.l.b16 %v18
  %v58 = vunpack.c.l.b16 %v19
  %v59 = vunpack.c.l.b16 %v20
  %v60 = vunpack.c.l.b16 %v21
  %v61 = vunpack.c.l.b16 %v22
  %v62 = vunpack.c.l.b16 %v23
  %v63 = vunpack.c.l.b16 %v24
  %v64 = vunpack.c.l.b16 %v25
  %v65 = vunpack.c.l.b16 %v26
  %v66 = vunpack.c.l.b16 %v27
  %v67 = vunpack.c.l.b16 %v28
  %v68 = vunpack.c.l.b16 %v29
  %v69 = vunpack.c.l.b16 %v30
  %v70 = vunpack.c.l.b16 %v31
  %v71 = vunpack.c.l.b16 %v32
  %v72 = vpack.c.b16 %v57, %v56
  %v73 = vpack.c.b16 %v59, %v58
  %v74 = vpack.c.b16 %v61, %v60
  %v75 = vpack.c.b16 %v63, %v62
  %v76 = vpack.c.b16 %v65, %v64
  %v77 = vpack.c.b16 %v67, %v66
  %v78 = vpack.c.b16 %v69, %v68
  %v79 = vpack.c.b16 %v71, %v70
  %88 = vmatprep.subr.bf16.mxu0 0
  %89 = vmatpush1.bf16.msra.mxu0 %v79
  %90 = vmatprep.subr.bf16.mxu0 0
  %91 = vmatpush1.bf16.msra.mxu0 %v78
  %92 = vmatprep.subr.bf16.mxu0 0
  %93 = vmatpush1.bf16.msra.mxu0 %v77
  %94 = vmatprep.subr.bf16.mxu0 0
  %95 = vmatpush1.bf16.msra.mxu0 %v76
  %96 = vmatprep.subr.bf16.mxu0 0
  %97 = vmatpush1.bf16.msra.mxu0 %v75
  %98 = vmatprep.subr.bf16.mxu0 0
  %99 = vmatpush1.bf16.msra.mxu0 %v74
  %100 = vmatprep.subr.bf16.mxu0 0
  %101 = vmatpush1.bf16.msra.mxu0 %v73
  %102 = vmatprep.subr.bf16.mxu0 0
  %103 = vmatpush1.bf16.msra.mxu0 %v72
  %104 = vmatprep.subr.bf16.mxu0 0
  %105 = vmatpush2.bf16.msra.mxu0 0
  %106 = vmatprep.subr.bf16.mxu0 0
  %107 = vmatpush2.bf16.msra.mxu0 0
  %108 = vmatprep.subr.bf16.mxu0 0
  %109 = vmatpush2.bf16.msra.mxu0 0
  %110 = vmatprep.subr.bf16.mxu0 0
  %111 = vmatpush2.bf16.msra.mxu0 0
  %112 = vmatprep.subr.bf16.mxu0 0
  %113 = vmatpush2.bf16.msra.mxu0 0
  %114 = vmatprep.subr.bf16.mxu0 0
  %115 = vmatpush2.bf16.msra.mxu0 0
  %116 = vmatprep.subr.bf16.mxu0 0
  %117 = vmatpush2.bf16.msra.mxu0 0
  %118 = vmatprep.subr.bf16.mxu0 0
  %119 = vmatpush2.bf16.msra.mxu0 0
  %120 = vmatprep.mubr.bf16.mxu0 0
  %121 = vmatmul.mubr.bf16.gmra.mxu0 %v16
  %v122 = vpop.f32.mrf.mxu0
  %v123 = vadd.f32 %v38, %v122
  %v124 = vpop.f32.mrf.mxu0
  %v125 = vpop.f32.mrf.mxu0
  %v126 = vpop.f32.mrf.mxu0
  %127 = vdwg.mxu0
  %128 = vmax.xlane.f32.xlu0 %v123
  %v129 = vpop.xlane.xlu0 %128
  %v130 = vsub.f32 %v123, %v129
  %v131 = vmul.f32 %v130, 1.442695
  %v132 = vpow.pop %v131
  %133 = vadd.xlane.f32.xlu0 %v132
  %v134 = vpop.xlane.xlu0 %133
  %v135 = vrcp.pop %v134
  %v136 = vmul.f32 %v132, %v135
  %137 = vst [vmem:[%s3] sm:$0xff] %v136
  // Predicated region
  $region14: #{gru_model_forward.5} parent=0 // pred_check
    _
  $region15: #{gru_model_forward.5} parent=0 // pred_check_branch
    %139 = sbr.rel (0) target = $region17
  $region16: #{gru_model_forward.5} parent=0 // pred_region
    _
  $region17: #{gru_model_forward.5} parent=0 // pred_fallthru
    _
  // Predicated region
  $region18: #{gru_model_forward.5} parent=0 // pred_check
    _
  $region19: #{gru_model_forward.5} parent=0 // pred_check_branch
    %141 = sbr.rel (0) target = $region21
  $region20: #{gru_model_forward.5} parent=0 // pred_region
    _
  $region21: #{gru_model_forward.5} parent=0 // pred_fallthru
    _

// kernel: gru_model_forward.3
$region0: #{gru_model_forward.3}
  #allocation0 [shape = 'u32[]', space=smem, size = 0x4, offset = 0x4, fixed_abs, tag = 'smem constant byte address 0x4 - core index']
  #allocation1 [shape = 'u32[144,128]{1,0:T(1,128)}', space=vmem, size = 0x12000, scoped, tag = 'internal scratch']
  %s0 = inlined_call_operand.vmem [shape: bf16[64,32], index: 0, kind: input, shape index: {}]
  %s1 = inlined_call_operand.vmem [shape: bf16[32,384], index: 1, kind: input, shape index: {}]
  %s2 = inlined_call_operand.vmem [shape: f32[1,384], index: 2, kind: input, shape index: {}]
  %s3 = inlined_call_operand.vmem [shape: f32[64,384], index: 3, kind: output, shape index: {}]
  %s4 = sld [smem:[#allocation0]]
  $region22: #{gru_model_forward.3} parent=0
    _
  %s6 = ssub.s32 1, %s4
  %s7 = scalar_select 0, %s6, %s4
  // Predicated region
  $region2: #{gru_model_forward.3} parent=0 // pred_check
    _
  $region3: #{gru_model_forward.3} parent=0 // pred_check_branch
    %9 = sbr.rel (0) target = $region5
  $region4: #{gru_model_forward.3} parent=0 // pred_region
    _
  $region5: #{gru_model_forward.3} parent=0 // pred_fallthru
    _
  // Predicated region
  $region6: #{gru_model_forward.3} parent=0 // pred_check
    _
  $region7: #{gru_model_forward.3} parent=0 // pred_check_branch
    %11 = sbr.rel (0) target = $region9
  $region8: #{gru_model_forward.3} parent=0 // pred_region
    _
  $region9: #{gru_model_forward.3} parent=0 // pred_fallthru
    _
  // Predicated region
  $region10: #{gru_model_forward.3} parent=0 // pred_check
    _
  $region11: #{gru_model_forward.3} parent=0 // pred_check_branch
    %13 = sbr.rel (0) target = $region13
  $region12: #{gru_model_forward.3} parent=0 // pred_region
    _
  $region13: #{gru_model_forward.3} parent=0 // pred_fallthru
    _
  %v15 = vld [vmem:[%s0] sm:$0xf]
  %v16 = vld [vmem:[%s0 + $0x4] sm:$0xf]
  %v17 = vld [vmem:[%s0 + $0x8] sm:$0xf]
  %v18 = vld [vmem:[%s0 + $0xc] sm:$0xf]
  %v19 = vld [vmem:[%s0 + $0x10] sm:$0xf]
  %v20 = vld [vmem:[%s0 + $0x14] sm:$0xf]
  %v21 = vld [vmem:[%s0 + $0x18] sm:$0xf]
  %v22 = vld [vmem:[%s0 + $0x1c] sm:$0xf]
  %v23 = vld [vmem:[%s1] sm:$0xff]
  %v24 = vld [vmem:[%s1 + $0x8] sm:$0xf]
  %v25 = vld [vmem:[%s1 + $0xc] sm:$0xff]
  %v26 = vld [vmem:[%s1 + $0x14] sm:$0xf]
  %v27 = vld [vmem:[%s1 + $0x18] sm:$0xff]
  %v28 = vld [vmem:[%s1 + $0x20] sm:$0xf]
  %v29 = vld [vmem:[%s1 + $0x24] sm:$0xff]
  %v30 = vld [vmem:[%s1 + $0x2c] sm:$0xf]
  %v31 = vld [vmem:[%s2] sm:$0x7]
  %v33 = vlaneseq
  %v34 = vshrl.u32 %v33, 7
  %v35 = vsub.s32 0, %v34
  %v36 = vrot.slane %v31, %v35
  %v37 = vlaneseq
  %v38 = vshrl.u32 %v37, 7
  %v39 = vsub.s32 1, %v38
  %v40 = vrot.slane %v31, %v39
  %v41 = vlaneseq
  %v42 = vshrl.u32 %v41, 7
  %v43 = vsub.s32 2, %v42
  %v44 = vrot.slane %v31, %v43
  %v56 = vunpack.c.l.b16 %v15
  %v57 = vunpack.c.l.b16 %v16
  %v58 = vunpack.c.l.b16 %v17
  %v59 = vunpack.c.l.b16 %v18
  %v60 = vunpack.c.l.b16 %v19
  %v61 = vunpack.c.l.b16 %v20
  %v62 = vunpack.c.l.b16 %v21
  %v63 = vunpack.c.l.b16 %v22
  %v64 = vpack.c.b16 %v57, %v56
  %v65 = vpack.c.b16 %v59, %v58
  %v66 = vpack.c.b16 %v61, %v60
  %v67 = vpack.c.b16 %v63, %v62
  %v76 = vunpack.c.l.b16 %v23
  %v77 = vunpack.c.h.b16 %v23
  %v78 = vunpack.c.l.b16 %v24
  %v79 = vunpack.c.l.b16 %v25
  %v80 = vunpack.c.h.b16 %v25
  %v81 = vunpack.c.l.b16 %v26
  %v82 = vunpack.c.l.b16 %v27
  %v83 = vunpack.c.h.b16 %v27
  %v84 = vunpack.c.l.b16 %v28
  %v85 = vunpack.c.l.b16 %v29
  %v86 = vunpack.c.h.b16 %v29
  %v87 = vunpack.c.l.b16 %v30
  %v88 = vpack.c.b16 %v79, %v76
  %v89 = vpack.c.b16 %v80, %v77
  %v90 = vpack.c.b16 %v81, %v78
  %v91 = vpack.c.b16 %v85, %v82
  %v92 = vpack.c.b16 %v86, %v83
  %v93 = vpack.c.b16 %v87, %v84
  %vm100 = vcmask 261120
  %v102 = vsel %vm100, %v64, 0
  %v105 = vsel %vm100, %v65, 0
  %v108 = vsel %vm100, %v66, 0
  %v111 = vsel %vm100, %v67, 0
  %113 = vmatprep.subr.bf16.mxu0 0
  %114 = vmatpush1.bf16.msra.mxu0 0
  %115 = vmatprep.subr.bf16.mxu0 0
  %116 = vmatpush1.bf16.msra.mxu0 0
  %117 = vmatprep.subr.bf16.mxu0 0
  %118 = vmatpush1.bf16.msra.mxu0 0
  %119 = vmatprep.subr.bf16.mxu0 0
  %120 = vmatpush1.bf16.msra.mxu0 0
  %121 = vmatprep.subr.bf16.mxu0 0
  %122 = vmatpush1.bf16.msra.mxu0 0
  %123 = vmatprep.subr.bf16.mxu0 0
  %124 = vmatpush1.bf16.msra.mxu0 0
  %125 = vmatprep.subr.bf16.mxu0 %v92
  %126 = vmatpush1.bf16.msra.mxu0 %v91
  %127 = vmatprep.subr.bf16.mxu0 %v89
  %128 = vmatpush1.bf16.msra.mxu0 %v88
  %129 = vmatprep.subr.bf16.mxu0 0
  %130 = vmatpush2.bf16.msra.mxu0 0
  %131 = vmatprep.subr.bf16.mxu0 0
  %132 = vmatpush2.bf16.msra.mxu0 0
  %133 = vmatprep.subr.bf16.mxu0 0
  %134 = vmatpush2.bf16.msra.mxu0 0
  %135 = vmatprep.subr.bf16.mxu0 0
  %136 = vmatpush2.bf16.msra.mxu0 0
  %137 = vmatprep.subr.bf16.mxu0 0
  %138 = vmatpush2.bf16.msra.mxu0 0
  %139 = vmatprep.subr.bf16.mxu0 0
  %140 = vmatpush2.bf16.msra.mxu0 0
  %141 = vmatprep.subr.bf16.mxu0 0
  %142 = vmatpush2.bf16.msra.mxu0 0
  %143 = vmatprep.subr.bf16.mxu0 0
  %144 = vmatpush2.bf16.msra.mxu0 0
  %145 = vmatprep.mubr.bf16.mxu0 0
  %146 = vmatmul.mubr.bf16.gmra.mxu0 %v102
  %v147 = vpop.f32.mrf.mxu0
  %v148 = vadd.f32 %v36, %v147
  %v149 = vpop.f32.mrf.mxu0
  %v150 = vadd.f32 %v40, %v149
  %v151 = vpop.f32.mrf.mxu0
  %v152 = vadd.f32 %v36, %v151
  %v153 = vpop.f32.mrf.mxu0
  %v154 = vadd.f32 %v40, %v153
  %155 = vmatprep.mubr.bf16.mxu0 0
  %156 = vmatmul.mubr.bf16.gmra.mxu0 %v105
  %v157 = vpop.f32.mrf.mxu0
  %v158 = vadd.f32 %v36, %v157
  %v159 = vpop.f32.mrf.mxu0
  %v160 = vadd.f32 %v40, %v159
  %v161 = vpop.f32.mrf.mxu0
  %v162 = vadd.f32 %v36, %v161
  %v163 = vpop.f32.mrf.mxu0
  %v164 = vadd.f32 %v40, %v163
  %165 = vmatprep.mubr.bf16.mxu0 0
  %166 = vmatmul.mubr.bf16.gmra.mxu0 %v108
  %v167 = vpop.f32.mrf.mxu0
  %v168 = vadd.f32 %v36, %v167
  %v169 = vpop.f32.mrf.mxu0
  %v170 = vadd.f32 %v40, %v169
  %v171 = vpop.f32.mrf.mxu0
  %v172 = vadd.f32 %v36, %v171
  %v173 = vpop.f32.mrf.mxu0
  %v174 = vadd.f32 %v40, %v173
  %175 = vmatprep.mubr.bf16.mxu0 0
  %176 = vmatmul.mubr.bf16.gmra.mxu0 %v111
  %v177 = vpop.f32.mrf.mxu0
  %v178 = vadd.f32 %v36, %v177
  %v179 = vpop.f32.mrf.mxu0
  %v180 = vadd.f32 %v40, %v179
  %v181 = vpop.f32.mrf.mxu0
  %v182 = vadd.f32 %v36, %v181
  %v183 = vpop.f32.mrf.mxu0
  %v184 = vadd.f32 %v40, %v183
  %185 = vdwg.mxu0
  %186 = vmatprep.subr.bf16.mxu0 0
  %187 = vmatpush1.bf16.msra.mxu0 0
  %188 = vmatprep.subr.bf16.mxu0 0
  %189 = vmatpush1.bf16.msra.mxu0 0
  %190 = vmatprep.subr.bf16.mxu0 0
  %191 = vmatpush1.bf16.msra.mxu0 0
  %192 = vmatprep.subr.bf16.mxu0 0
  %193 = vmatpush1.bf16.msra.mxu0 0
  %194 = vmatprep.subr.bf16.mxu0 0
  %195 = vmatpush1.bf16.msra.mxu0 0
  %196 = vmatprep.subr.bf16.mxu0 0
  %197 = vmatpush1.bf16.msra.mxu0 0
  %198 = vmatprep.subr.bf16.mxu0 0
  %199 = vmatpush1.bf16.msra.mxu0 %v93
  %200 = vmatprep.subr.bf16.mxu0 0
  %201 = vmatpush1.bf16.msra.mxu0 %v90
  %202 = vmatprep.subr.bf16.mxu0 0
  %203 = vmatpush2.bf16.msra.mxu0 0
  %204 = vmatprep.subr.bf16.mxu0 0
  %205 = vmatpush2.bf16.msra.mxu0 0
  %206 = vmatprep.subr.bf16.mxu0 0
  %207 = vmatpush2.bf16.msra.mxu0 0
  %208 = vmatprep.subr.bf16.mxu0 0
  %209 = vmatpush2.bf16.msra.mxu0 0
  %210 = vmatprep.subr.bf16.mxu0 0
  %211 = vmatpush2.bf16.msra.mxu0 0
  %212 = vmatprep.subr.bf16.mxu0 0
  %213 = vmatpush2.bf16.msra.mxu0 0
  %214 = vmatprep.subr.bf16.mxu0 0
  %215 = vmatpush2.bf16.msra.mxu0 0
  %216 = vmatprep.subr.bf16.mxu0 0
  %217 = vmatpush2.bf16.msra.mxu0 0
  %218 = vmatprep.mubr.bf16.mxu0 0
  %219 = vmatmul.mubr.bf16.gmra.mxu0 %v102
  %v220 = vpop.f32.mrf.mxu0
  %v221 = vadd.f32 %v44, %v220
  %v222 = vpop.f32.mrf.mxu0
  %v223 = vpop.f32.mrf.mxu0
  %v224 = vadd.f32 %v44, %v223
  %v225 = vpop.f32.mrf.mxu0
  %226 = vmatprep.mubr.bf16.mxu0 0
  %227 = vmatmul.mubr.bf16.gmra.mxu0 %v105
  %v228 = vpop.f32.mrf.mxu0
  %v229 = vadd.f32 %v44, %v228
  %v230 = vpop.f32.mrf.mxu0
  %v231 = vpop.f32.mrf.mxu0
  %v232 = vadd.f32 %v44, %v231
  %v233 = vpop.f32.mrf.mxu0
  %234 = vmatprep.mubr.bf16.mxu0 0
  %235 = vmatmul.mubr.bf16.gmra.mxu0 %v108
  %v236 = vpop.f32.mrf.mxu0
  %v237 = vadd.f32 %v44, %v236
  %v238 = vpop.f32.mrf.mxu0
  %v239 = vpop.f32.mrf.mxu0
  %v240 = vadd.f32 %v44, %v239
  %v241 = vpop.f32.mrf.mxu0
  %242 = vmatprep.mubr.bf16.mxu0 0
  %243 = vmatmul.mubr.bf16.gmra.mxu0 %v111
  %v244 = vpop.f32.mrf.mxu0
  %v245 = vadd.f32 %v44, %v244
  %v246 = vpop.f32.mrf.mxu0
  %v247 = vpop.f32.mrf.mxu0
  %v248 = vadd.f32 %v44, %v247
  %v249 = vpop.f32.mrf.mxu0
  %250 = vdwg.mxu0
  %251 = vst [vmem:[%s3] sm:$0xff] %v148
  %252 = vst [vmem:[%s3 + $0x8] sm:$0xff] %v150
  %253 = vst [vmem:[%s3 + $0x10] sm:$0xff] %v221
  %254 = vst [vmem:[%s3 + $0x18] sm:$0xff] %v152
  %255 = vst [vmem:[%s3 + $0x20] sm:$0xff] %v154
  %256 = vst [vmem:[%s3 + $0x28] sm:$0xff] %v224
  %257 = vst [vmem:[%s3 + $0x30] sm:$0xff] %v158
  %258 = vst [vmem:[%s3 + $0x38] sm:$0xff] %v160
  %259 = vst [vmem:[%s3 + $0x40] sm:$0xff] %v229
  %260 = vst [vmem:[%s3 + $0x48] sm:$0xff] %v162
  %261 = vst [vmem:[%s3 + $0x50] sm:$0xff] %v164
  %262 = vst [vmem:[%s3 + $0x58] sm:$0xff] %v232
  %263 = vst [vmem:[%s3 + $0x60] sm:$0xff] %v168
  %264 = vst [vmem:[%s3 + $0x68] sm:$0xff] %v170
  %265 = vst [vmem:[%s3 + $0x70] sm:$0xff] %v237
  %266 = vst [vmem:[%s3 + $0x78] sm:$0xff] %v172
  %267 = vst [vmem:[%s3 + $0x80] sm:$0xff] %v174
  %268 = vst [vmem:[%s3 + $0x88] sm:$0xff] %v240
  %269 = vst [vmem:[%s3 + $0x90] sm:$0xff] %v178
  %270 = vst [vmem:[%s3 + $0x98] sm:$0xff] %v180
  %271 = vst [vmem:[%s3 + $0xa0] sm:$0xff] %v245
  %272 = vst [vmem:[%s3 + $0xa8] sm:$0xff] %v182
  %273 = vst [vmem:[%s3 + $0xb0] sm:$0xff] %v184
  %274 = vst [vmem:[%s3 + $0xb8] sm:$0xff] %v248
  // Predicated region
  $region14: #{gru_model_forward.3} parent=0 // pred_check
    _
  $region15: #{gru_model_forward.3} parent=0 // pred_check_branch
    %276 = sbr.rel (0) target = $region17
  $region16: #{gru_model_forward.3} parent=0 // pred_region
    _
  $region17: #{gru_model_forward.3} parent=0 // pred_fallthru
    _
  // Predicated region
  $region18: #{gru_model_forward.3} parent=0 // pred_check
    _
  $region19: #{gru_model_forward.3} parent=0 // pred_check_branch
    %278 = sbr.rel (0) target = $region21
  $region20: #{gru_model_forward.3} parent=0 // pred_region
    _
  $region21: #{gru_model_forward.3} parent=0 // pred_fallthru
    _

// kernel: gru_model_forward.4
$region0: #{gru_model_forward.4}
  #allocation0 [shape = 'u32[]', space=smem, size = 0x4, offset = 0x4, fixed_abs, tag = 'smem constant byte address 0x4 - core index']
  #allocation1 [shape = 'u32[144,128]{1,0:T(1,128)}', space=vmem, size = 0x12000, scoped, tag = 'internal scratch']
  %s0 = inlined_call_operand.vmem [shape: f32[8,8,384], index: 0, kind: input, shape index: {}]
  %s1 = inlined_call_operand.vmem [shape: bf16[128,384], index: 1, kind: input, shape index: {}]
  %s2 = inlined_call_operand.vmem [shape: f32[1,384], index: 2, kind: input, shape index: {}]
  %s3 = inlined_call_operand.vmem [shape: f32[8,128], index: 3, kind: output, shape index: {}]
  %s4 = sld [smem:[#allocation0]]
  $region26: #{gru_model_forward.4} parent=0
    _
  %s6 = ssub.s32 1, %s4
  %s7 = scalar_select 0, %s6, %s4
  // Predicated region
  $region2: #{gru_model_forward.4} parent=0 // pred_check
    _
  $region3: #{gru_model_forward.4} parent=0 // pred_check_branch
    %9 = sbr.rel (0) target = $region5
  $region4: #{gru_model_forward.4} parent=0 // pred_region
    _
  $region5: #{gru_model_forward.4} parent=0 // pred_fallthru
    _
  // Predicated region
  $region6: #{gru_model_forward.4} parent=0 // pred_check
    _
  $region7: #{gru_model_forward.4} parent=0 // pred_check_branch
    %11 = sbr.rel (0) target = $region9
  $region8: #{gru_model_forward.4} parent=0 // pred_region
    _
  $region9: #{gru_model_forward.4} parent=0 // pred_fallthru
    _
  // Predicated region
  $region10: #{gru_model_forward.4} parent=0 // pred_check
    _
  $region11: #{gru_model_forward.4} parent=0 // pred_check_branch
    %13 = sbr.rel (0) target = $region13
  $region12: #{gru_model_forward.4} parent=0 // pred_region
    _
  $region13: #{gru_model_forward.4} parent=0 // pred_fallthru
    _
  %p15 = scmp.eq.s32.totalorder 0, 0
  // Predicated region
  $region14: #{gru_model_forward.4} parent=0 // pred_check
    %p16 = pneg %p15
  $region15: #{gru_model_forward.4} parent=0 // pred_check_branch
    %18 = sbr.rel (%p16) target = $region17
  $region16: #{gru_model_forward.4} parent=0 // pred_region
    %19 = vst [vmem:[%s3] sm:$0xff] 0.0
  $region17: #{gru_model_forward.4} parent=0 // pred_fallthru
    _
  %v20 = vld [vmem:[%s1] sm:$0xff]
  %v21 = vld [vmem:[%s1 + $0x8] sm:$0xf]
  %v22 = vld [vmem:[%s1 + $0xc] sm:$0xff]
  %v23 = vld [vmem:[%s1 + $0x14] sm:$0xf]
  %v24 = vld [vmem:[%s1 + $0x18] sm:$0xff]
  %v25 = vld [vmem:[%s1 + $0x20] sm:$0xf]
  %v26 = vld [vmem:[%s1 + $0x24] sm:$0xff]
  %v27 = vld [vmem:[%s1 + $0x2c] sm:$0xf]
  %v28 = vld [vmem:[%s1 + $0x30] sm:$0xff]
  %v29 = vld [vmem:[%s1 + $0x38] sm:$0xf]
  %v30 = vld [vmem:[%s1 + $0x3c] sm:$0xff]
  %v31 = vld [vmem:[%s1 + $0x44] sm:$0xf]
  %v32 = vld [vmem:[%s1 + $0x48] sm:$0xff]
  %v33 = vld [vmem:[%s1 + $0x50] sm:$0xf]
  %v34 = vld [vmem:[%s1 + $0x54] sm:$0xff]
  %v35 = vld [vmem:[%s1 + $0x5c] sm:$0xf]
  %v36 = vld [vmem:[%s1 + $0x60] sm:$0xff]
  %v37 = vld [vmem:[%s1 + $0x68] sm:$0xf]
  %v38 = vld [vmem:[%s1 + $0x6c] sm:$0xff]
  %v39 = vld [vmem:[%s1 + $0x74] sm:$0xf]
  %v40 = vld [vmem:[%s1 + $0x78] sm:$0xff]
  %v41 = vld [vmem:[%s1 + $0x80] sm:$0xf]
  %v42 = vld [vmem:[%s1 + $0x84] sm:$0xff]
  %v43 = vld [vmem:[%s1 + $0x8c] sm:$0xf]
  %v44 = vld [vmem:[%s1 + $0x90] sm:$0xff]
  %v45 = vld [vmem:[%s1 + $0x98] sm:$0xf]
  %v46 = vld [vmem:[%s1 + $0x9c] sm:$0xff]
  %v47 = vld [vmem:[%s1 + $0xa4] sm:$0xf]
  %v48 = vld [vmem:[%s1 + $0xa8] sm:$0xff]
  %v49 = vld [vmem:[%s1 + $0xb0] sm:$0xf]
  %v50 = vld [vmem:[%s1 + $0xb4] sm:$0xff]
  %v51 = vld [vmem:[%s1 + $0xbc] sm:$0xf]
  %v52 = vld [vmem:[%s2] sm:$0x7]
  %v53 = vld [vmem:[%s3] sm:$0xff]
  %v54 = vld [vmem:[%s0] sm:$0xff]
  %v55 = vld [vmem:[%s0 + $0x8] sm:$0xff]
  %v56 = vld [vmem:[%s0 + $0x10] sm:$0xff]
  %v57 = vpack.c.bf16 %v53, %v53
  %v59 = vlaneseq
  %v60 = vshrl.u32 %v59, 7
  %v61 = vsub.s32 0, %v60
  %v62 = vrot.slane %v52, %v61
  %v63 = vlaneseq
  %v64 = vshrl.u32 %v63, 7
  %v65 = vsub.s32 1, %v64
  %v66 = vrot.slane %v52, %v65
  %v67 = vlaneseq
  %v68 = vshrl.u32 %v67, 7
  %v69 = vsub.s32 2, %v68
  %v70 = vrot.slane %v52, %v69
  %v106 = vunpack.c.l.b16 %v20
  %v107 = vunpack.c.h.b16 %v20
  %v108 = vunpack.c.l.b16 %v21
  %v109 = vunpack.c.l.b16 %v22
  %v110 = vunpack.c.h.b16 %v22
  %v111 = vunpack.c.l.b16 %v23
  %v112 = vunpack.c.l.b16 %v24
  %v113 = vunpack.c.h.b16 %v24
  %v114 = vunpack.c.l.b16 %v25
  %v115 = vunpack.c.l.b16 %v26
  %v116 = vunpack.c.h.b16 %v26
  %v117 = vunpack.c.l.b16 %v27
  %v118 = vunpack.c.l.b16 %v28
  %v119 = vunpack.c.h.b16 %v28
  %v120 = vunpack.c.l.b16 %v29
  %v121 = vunpack.c.l.b16 %v30
  %v122 = vunpack.c.h.b16 %v30
  %v123 = vunpack.c.l.b16 %v31
  %v124 = vunpack.c.l.b16 %v32
  %v125 = vunpack.c.h.b16 %v32
  %v126 = vunpack.c.l.b16 %v33
  %v127 = vunpack.c.l.b16 %v34
  %v128 = vunpack.c.h.b16 %v34
  %v129 = vunpack.c.l.b16 %v35
  %v130 = vunpack.c.l.b16 %v36
  %v131 = vunpack.c.h.b16 %v36
  %v132 = vunpack.c.l.b16 %v37
  %v133 = vunpack.c.l.b16 %v38
  %v134 = vunpack.c.h.b16 %v38
  %v135 = vunpack.c.l.b16 %v39
  %v136 = vunpack.c.l.b16 %v40
  %v137 = vunpack.c.h.b16 %v40
  %v138 = vunpack.c.l.b16 %v41
  %v139 = vunpack.c.l.b16 %v42
  %v140 = vunpack.c.h.b16 %v42
  %v141 = vunpack.c.l.b16 %v43
  %v142 = vunpack.c.l.b16 %v44
  %v143 = vunpack.c.h.b16 %v44
  %v144 = vunpack.c.l.b16 %v45
  %v145 = vunpack.c.l.b16 %v46
  %v146 = vunpack.c.h.b16 %v46
  %v147 = vunpack.c.l.b16 %v47
  %v148 = vunpack.c.l.b16 %v48
  %v149 = vunpack.c.h.b16 %v48
  %v150 = vunpack.c.l.b16 %v49
  %v151 = vunpack.c.l.b16 %v50
  %v152 = vunpack.c.h.b16 %v50
  %v153 = vunpack.c.l.b16 %v51
  %v154 = vpack.c.b16 %v109, %v106
  %v155 = vpack.c.b16 %v110, %v107
  %v156 = vpack.c.b16 %v111, %v108
  %v157 = vpack.c.b16 %v115, %v112
  %v158 = vpack.c.b16 %v116, %v113
  %v159 = vpack.c.b16 %v117, %v114
  %v160 = vpack.c.b16 %v121, %v118
  %v161 = vpack.c.b16 %v122, %v119
  %v162 = vpack.c.b16 %v123, %v120
  %v163 = vpack.c.b16 %v127, %v124
  %v164 = vpack.c.b16 %v128, %v125
  %v165 = vpack.c.b16 %v129, %v126
  %v166 = vpack.c.b16 %v133, %v130
  %v167 = vpack.c.b16 %v134, %v131
  %v168 = vpack.c.b16 %v135, %v132
  %v169 = vpack.c.b16 %v139, %v136
  %v170 = vpack.c.b16 %v140, %v137
  %v171 = vpack.c.b16 %v141, %v138
  %v172 = vpack.c.b16 %v145, %v142
  %v173 = vpack.c.b16 %v146, %v143
  %v174 = vpack.c.b16 %v147, %v144
  %v175 = vpack.c.b16 %v151, %v148
  %v176 = vpack.c.b16 %v152, %v149
  %v177 = vpack.c.b16 %v153, %v150
  %202 = vmatprep.subr.bf16.mxu0 %v176
  %203 = vmatpush1.bf16.msra.mxu0 %v175
  %204 = vmatprep.subr.bf16.mxu0 %v173
  %205 = vmatpush1.bf16.msra.mxu0 %v172
  %206 = vmatprep.subr.bf16.mxu0 %v170
  %207 = vmatpush1.bf16.msra.mxu0 %v169
  %208 = vmatprep.subr.bf16.mxu0 %v167
  %209 = vmatpush1.bf16.msra.mxu0 %v166
  %210 = vmatprep.subr.bf16.mxu0 %v164
  %211 = vmatpush1.bf16.msra.mxu0 %v163
  %212 = vmatprep.subr.bf16.mxu0 %v161
  %213 = vmatpush1.bf16.msra.mxu0 %v160
  %214 = vmatprep.subr.bf16.mxu0 %v158
  %215 = vmatpush1.bf16.msra.mxu0 %v157
  %216 = vmatprep.subr.bf16.mxu0 %v155
  %217 = vmatpush1.bf16.msra.mxu0 %v154
  %218 = vmatprep.subr.bf16.mxu0 0
  %219 = vmatpush2.bf16.msra.mxu0 0
  %220 = vmatprep.subr.bf16.mxu0 0
  %221 = vmatpush2.bf16.msra.mxu0 0
  %222 = vmatprep.subr.bf16.mxu0 0
  %223 = vmatpush2.bf16.msra.mxu0 0
  %224 = vmatprep.subr.bf16.mxu0 0
  %225 = vmatpush2.bf16.msra.mxu0 0
  %226 = vmatprep.subr.bf16.mxu0 0
  %227 = vmatpush2.bf16.msra.mxu0 0
  %228 = vmatprep.subr.bf16.mxu0 0
  %229 = vmatpush2.bf16.msra.mxu0 0
  %230 = vmatprep.subr.bf16.mxu0 0
  %231 = vmatpush2.bf16.msra.mxu0 0
  %232 = vmatprep.subr.bf16.mxu0 0
  %233 = vmatpush2.bf16.msra.mxu0 0
  %234 = vmatprep.mubr.bf16.mxu0 0
  %235 = vmatmul.mubr.bf16.gmra.mxu0 %v57
  %v236 = vpop.f32.mrf.mxu0
  %v237 = vadd.f32 %v62, %v236
  %v238 = vpop.f32.mrf.mxu0
  %v239 = vadd.f32 %v66, %v238
  %v240 = vpop.f32.mrf.mxu0
  %v241 = vpop.f32.mrf.mxu0
  %242 = vdwg.mxu0
  %243 = vmatprep.subr.bf16.mxu0 0
  %244 = vmatpush1.bf16.msra.mxu0 %v177
  %245 = vmatprep.subr.bf16.mxu0 0
  %246 = vmatpush1.bf16.msra.mxu0 %v174
  %247 = vmatprep.subr.bf16.mxu0 0
  %248 = vmatpush1.bf16.msra.mxu0 %v171
  %249 = vmatprep.subr.bf16.mxu0 0
  %250 = vmatpush1.bf16.msra.mxu0 %v168
  %251 = vmatprep.subr.bf16.mxu0 0
  %252 = vmatpush1.bf16.msra.mxu0 %v165
  %253 = vmatprep.subr.bf16.mxu0 0
  %254 = vmatpush1.bf16.msra.mxu0 %v162
  %255 = vmatprep.subr.bf16.mxu0 0
  %256 = vmatpush1.bf16.msra.mxu0 %v159
  %257 = vmatprep.subr.bf16.mxu0 0
  %258 = vmatpush1.bf16.msra.mxu0 %v156
  %259 = vmatprep.subr.bf16.mxu0 0
  %260 = vmatpush2.bf16.msra.mxu0 0
  %261 = vmatprep.subr.bf16.mxu0 0
  %262 = vmatpush2.bf16.msra.mxu0 0
  %263 = vmatprep.subr.bf16.mxu0 0
  %264 = vmatpush2.bf16.msra.mxu0 0
  %265 = vmatprep.subr.bf16.mxu0 0
  %266 = vmatpush2.bf16.msra.mxu0 0
  %267 = vmatprep.subr.bf16.mxu0 0
  %268 = vmatpush2.bf16.msra.mxu0 0
  %269 = vmatprep.subr.bf16.mxu0 0
  %270 = vmatpush2.bf16.msra.mxu0 0
  %271 = vmatprep.subr.bf16.mxu0 0
  %272 = vmatpush2.bf16.msra.mxu0 0
  %273 = vmatprep.subr.bf16.mxu0 0
  %274 = vmatpush2.bf16.msra.mxu0 0
  %275 = vmatprep.mubr.bf16.mxu0 0
  %276 = vmatmul.mubr.bf16.gmra.mxu0 %v57
  %v277 = vpop.f32.mrf.mxu0
  %v278 = vadd.f32 %v70, %v277
  %v279 = vpop.f32.mrf.mxu0
  %v280 = vpop.f32.mrf.mxu0
  %v281 = vpop.f32.mrf.mxu0
  %282 = vdwg.mxu0
  %v283 = vadd.f32 %v54, %v237
  %v284 = vxor.u32 %v283, 2147483648
  %v285 = vmul.f32 %v284, 1.442695
  %v286 = vpow.pop %v285
  %v287 = vadd.f32 %v286, 1.0
  %v288 = vrcp.pop %v287
  %v289 = vmul.f32 1.0, %v288
  %v290 = vadd.f32 %v55, %v239
  %v291 = vxor.u32 %v290, 2147483648
  %v292 = vmul.f32 %v291, 1.442695
  %v293 = vpow.pop %v292
  %v294 = vadd.f32 %v293, 1.0
  %v295 = vrcp.pop %v294
  %v296 = vmul.f32 1.0, %v295
  %v297 = vmul.f32 %v289, %v278
  %v298 = vadd.f32 %v56, %v297
  %v299 = vtanh.pop %v298
  %v300 = vsub.f32 1.0, %v296
  %v301 = vmul.f32 %v300, %v299
  %v302 = vmul.f32 %v296, %v53
  %v303 = vadd.f32 %v301, %v302
  %s304 = scalar_lea.vmem %s0, 24
  %v305 = vld [vmem:[%s304] sm:$0xff]
  %v306 = vld [vmem:[%s304 + $0x8] sm:$0xff]
  %v307 = vld [vmem:[%s304 + $0x10] sm:$0xff]
  %v308 = vpack.c.bf16 %v303, %v303
  %309 = vmatprep.subr.bf16.mxu0 %v176
  %310 = vmatpush1.bf16.msra.mxu0 %v175
  %311 = vmatprep.subr.bf16.mxu0 %v173
  %312 = vmatpush1.bf16.msra.mxu0 %v172
  %313 = vmatprep.subr.bf16.mxu0 %v170
  %314 = vmatpush1.bf16.msra.mxu0 %v169
  %315 = vmatprep.subr.bf16.mxu0 %v167
  %316 = vmatpush1.bf16.msra.mxu0 %v166
  %317 = vmatprep.subr.bf16.mxu0 %v164
  %318 = vmatpush1.bf16.msra.mxu0 %v163
  %319 = vmatprep.subr.bf16.mxu0 %v161
  %320 = vmatpush1.bf16.msra.mxu0 %v160
  %321 = vmatprep.subr.bf16.mxu0 %v158
  %322 = vmatpush1.bf16.msra.mxu0 %v157
  %323 = vmatprep.subr.bf16.mxu0 %v155
  %324 = vmatpush1.bf16.msra.mxu0 %v154
  %325 = vmatprep.subr.bf16.mxu0 0
  %326 = vmatpush2.bf16.msra.mxu0 0
  %327 = vmatprep.subr.bf16.mxu0 0
  %328 = vmatpush2.bf16.msra.mxu0 0
  %329 = vmatprep.subr.bf16.mxu0 0
  %330 = vmatpush2.bf16.msra.mxu0 0
  %331 = vmatprep.subr.bf16.mxu0 0
  %332 = vmatpush2.bf16.msra.mxu0 0
  %333 = vmatprep.subr.bf16.mxu0 0
  %334 = vmatpush2.bf16.msra.mxu0 0
  %335 = vmatprep.subr.bf16.mxu0 0
  %336 = vmatpush2.bf16.msra.mxu0 0
  %337 = vmatprep.subr.bf16.mxu0 0
  %338 = vmatpush2.bf16.msra.mxu0 0
  %339 = vmatprep.subr.bf16.mxu0 0
  %340 = vmatpush2.bf16.msra.mxu0 0
  %341 = vmatprep.mubr.bf16.mxu0 0
  %342 = vmatmul.mubr.bf16.gmra.mxu0 %v308
  %v343 = vpop.f32.mrf.mxu0
  %v344 = vadd.f32 %v62, %v343
  %v345 = vpop.f32.mrf.mxu0
  %v346 = vadd.f32 %v66, %v345
  %v347 = vpop.f32.mrf.mxu0
  %v348 = vpop.f32.mrf.mxu0
  %349 = vdwg.mxu0
  %350 = vmatprep.subr.bf16.mxu0 0
  %351 = vmatpush1.bf16.msra.mxu0 %v177
  %352 = vmatprep.subr.bf16.mxu0 0
  %353 = vmatpush1.bf16.msra.mxu0 %v174
  %354 = vmatprep.subr.bf16.mxu0 0
  %355 = vmatpush1.bf16.msra.mxu0 %v171
  %356 = vmatprep.subr.bf16.mxu0 0
  %357 = vmatpush1.bf16.msra.mxu0 %v168
  %358 = vmatprep.subr.bf16.mxu0 0
  %359 = vmatpush1.bf16.msra.mxu0 %v165
  %360 = vmatprep.subr.bf16.mxu0 0
  %361 = vmatpush1.bf16.msra.mxu0 %v162
  %362 = vmatprep.subr.bf16.mxu0 0
  %363 = vmatpush1.bf16.msra.mxu0 %v159
  %364 = vmatprep.subr.bf16.mxu0 0
  %365 = vmatpush1.bf16.msra.mxu0 %v156
  %366 = vmatprep.subr.bf16.mxu0 0
  %367 = vmatpush2.bf16.msra.mxu0 0
  %368 = vmatprep.subr.bf16.mxu0 0
  %369 = vmatpush2.bf16.msra.mxu0 0
  %370 = vmatprep.subr.bf16.mxu0 0
  %371 = vmatpush2.bf16.msra.mxu0 0
  %372 = vmatprep.subr.bf16.mxu0 0
  %373 = vmatpush2.bf16.msra.mxu0 0
  %374 = vmatprep.subr.bf16.mxu0 0
  %375 = vmatpush2.bf16.msra.mxu0 0
  %376 = vmatprep.subr.bf16.mxu0 0
  %377 = vmatpush2.bf16.msra.mxu0 0
  %378 = vmatprep.subr.bf16.mxu0 0
  %379 = vmatpush2.bf16.msra.mxu0 0
  %380 = vmatprep.subr.bf16.mxu0 0
  %381 = vmatpush2.bf16.msra.mxu0 0
  %382 = vmatprep.mubr.bf16.mxu0 0
  %383 = vmatmul.mubr.bf16.gmra.mxu0 %v308
  %v384 = vpop.f32.mrf.mxu0
  %v385 = vadd.f32 %v70, %v384
  %v386 = vpop.f32.mrf.mxu0
  %v387 = vpop.f32.mrf.mxu0
  %v388 = vpop.f32.mrf.mxu0
  %389 = vdwg.mxu0
  %v390 = vadd.f32 %v305, %v344
  %v391 = vxor.u32 %v390, 2147483648
  %v392 = vmul.f32 %v391, 1.442695
  %v393 = vpow.pop %v392
  %v394 = vadd.f32 %v393, 1.0
  %v395 = vrcp.pop %v394
  %v396 = vmul.f32 1.0, %v395
  %v397 = vadd.f32 %v306, %v346
  %v398 = vxor.u32 %v397, 2147483648
  %v399 = vmul.f32 %v398, 1.442695
  %v400 = vpow.pop %v399
  %v401 = vadd.f32 %v400, 1.0
  %v402 = vrcp.pop %v401
  %v403 = vmul.f32 1.0, %v402
  %v404 = vmul.f32 %v396, %v385
  %v405 = vadd.f32 %v307, %v404
  %v406 = vtanh.pop %v405
  %v407 = vsub.f32 1.0, %v403
  %v408 = vmul.f32 %v407, %v406
  %v409 = vmul.f32 %v403, %v303
  %v410 = vadd.f32 %v408, %v409
  %s411 = scalar_lea.vmem %s0, 48
  %v412 = vld [vmem:[%s411] sm:$0xff]
  %v413 = vld [vmem:[%s411 + $0x8] sm:$0xff]
  %v414 = vld [vmem:[%s411 + $0x10] sm:$0xff]
  %v415 = vpack.c.bf16 %v410, %v410
  %416 = vmatprep.subr.bf16.mxu0 %v176
  %417 = vmatpush1.bf16.msra.mxu0 %v175
  %418 = vmatprep.subr.bf16.mxu0 %v173
  %419 = vmatpush1.bf16.msra.mxu0 %v172
  %420 = vmatprep.subr.bf16.mxu0 %v170
  %421 = vmatpush1.bf16.msra.mxu0 %v169
  %422 = vmatprep.subr.bf16.mxu0 %v167
  %423 = vmatpush1.bf16.msra.mxu0 %v166
  %424 = vmatprep.subr.bf16.mxu0 %v164
  %425 = vmatpush1.bf16.msra.mxu0 %v163
  %426 = vmatprep.subr.bf16.mxu0 %v161
  %427 = vmatpush1.bf16.msra.mxu0 %v160
  %428 = vmatprep.subr.bf16.mxu0 %v158
  %429 = vmatpush1.bf16.msra.mxu0 %v157
  %430 = vmatprep.subr.bf16.mxu0 %v155
  %431 = vmatpush1.bf16.msra.mxu0 %v154
  %432 = vmatprep.subr.bf16.mxu0 0
  %433 = vmatpush2.bf16.msra.mxu0 0
  %434 = vmatprep.subr.bf16.mxu0 0
  %435 = vmatpush2.bf16.msra.mxu0 0
  %436 = vmatprep.subr.bf16.mxu0 0
  %437 = vmatpush2.bf16.msra.mxu0 0
  %438 = vmatprep.subr.bf16.mxu0 0
  %439 = vmatpush2.bf16.msra.mxu0 0
  %440 = vmatprep.subr.bf16.mxu0 0
  %441 = vmatpush2.bf16.msra.mxu0 0
  %442 = vmatprep.subr.bf16.mxu0 0
  %443 = vmatpush2.bf16.msra.mxu0 0
  %444 = vmatprep.subr.bf16.mxu0 0
  %445 = vmatpush2.bf16.msra.mxu0 0
  %446 = vmatprep.subr.bf16.mxu0 0
  %447 = vmatpush2.bf16.msra.mxu0 0
  %448 = vmatprep.mubr.bf16.mxu0 0
  %449 = vmatmul.mubr.bf16.gmra.mxu0 %v415
  %v450 = vpop.f32.mrf.mxu0
  %v451 = vadd.f32 %v62, %v450
  %v452 = vpop.f32.mrf.mxu0
  %v453 = vadd.f32 %v66, %v452
  %v454 = vpop.f32.mrf.mxu0
  %v455 = vpop.f32.mrf.mxu0
  %456 = vdwg.mxu0
  %457 = vmatprep.subr.bf16.mxu0 0
  %458 = vmatpush1.bf16.msra.mxu0 %v177
  %459 = vmatprep.subr.bf16.mxu0 0
  %460 = vmatpush1.bf16.msra.mxu0 %v174
  %461 = vmatprep.subr.bf16.mxu0 0
  %462 = vmatpush1.bf16.msra.mxu0 %v171
  %463 = vmatprep.subr.bf16.mxu0 0
  %464 = vmatpush1.bf16.msra.mxu0 %v168
  %465 = vmatprep.subr.bf16.mxu0 0
  %466 = vmatpush1.bf16.msra.mxu0 %v165
  %467 = vmatprep.subr.bf16.mxu0 0
  %468 = vmatpush1.bf16.msra.mxu0 %v162
  %469 = vmatprep.subr.bf16.mxu0 0
  %470 = vmatpush1.bf16.msra.mxu0 %v159
  %471 = vmatprep.subr.bf16.mxu0 0
  %472 = vmatpush1.bf16.msra.mxu0 %v156
  %473 = vmatprep.subr.bf16.mxu0 0
  %474 = vmatpush2.bf16.msra.mxu0 0
  %475 = vmatprep.subr.bf16.mxu0 0
  %476 = vmatpush2.bf16.msra.mxu0 0
  %477 = vmatprep.subr.bf16.mxu0 0
  %478 = vmatpush2.bf16.msra.mxu0 0
  %479 = vmatprep.subr.bf16.mxu0 0
  %480 = vmatpush2.bf16.msra.mxu0 0
  %481 = vmatprep.subr.bf16.mxu0 0
  %482 = vmatpush2.bf16.msra.mxu0 0
  %483 = vmatprep.subr.bf16.mxu0 0
  %484 = vmatpush2.bf16.msra.mxu0 0
  %485 = vmatprep.subr.bf16.mxu0 0
  %486 = vmatpush2.bf16.msra.mxu0 0
  %487 = vmatprep.subr.bf16.mxu0 0
  %488 = vmatpush2.bf16.msra.mxu0 0
  %489 = vmatprep.mubr.bf16.mxu0 0
  %490 = vmatmul.mubr.bf16.gmra.mxu0 %v415
  %v491 = vpop.f32.mrf.mxu0
  %v492 = vadd.f32 %v70, %v491
  %v493 = vpop.f32.mrf.mxu0
  %v494 = vpop.f32.mrf.mxu0
  %v495 = vpop.f32.mrf.mxu0
  %496 = vdwg.mxu0
  %v497 = vadd.f32 %v412, %v451
  %v498 = vxor.u32 %v497, 2147483648
  %v499 = vmul.f32 %v498, 1.442695
  %v500 = vpow.pop %v499
  %v501 = vadd.f32 %v500, 1.0
  %v502 = vrcp.pop %v501
  %v503 = vmul.f32 1.0, %v502
  %v504 = vadd.f32 %v413, %v453
  %v505 = vxor.u32 %v504, 2147483648
  %v506 = vmul.f32 %v505, 1.442695
  %v507 = vpow.pop %v506
  %v508 = vadd.f32 %v507, 1.0
  %v509 = vrcp.pop %v508
  %v510 = vmul.f32 1.0, %v509
  %v511 = vmul.f32 %v503, %v492
  %v512 = vadd.f32 %v414, %v511
  %v513 = vtanh.pop %v512
  %v514 = vsub.f32 1.0, %v510
  %v515 = vmul.f32 %v514, %v513
  %v516 = vmul.f32 %v510, %v410
  %v517 = vadd.f32 %v515, %v516
  %s518 = scalar_lea.vmem %s0, 72
  %v519 = vld [vmem:[%s518] sm:$0xff]
  %v520 = vld [vmem:[%s518 + $0x8] sm:$0xff]
  %v521 = vld [vmem:[%s518 + $0x10] sm:$0xff]
  %v522 = vpack.c.bf16 %v517, %v517
  %523 = vmatprep.subr.bf16.mxu0 %v176
  %524 = vmatpush1.bf16.msra.mxu0 %v175
  %525 = vmatprep.subr.bf16.mxu0 %v173
  %526 = vmatpush1.bf16.msra.mxu0 %v172
  %527 = vmatprep.subr.bf16.mxu0 %v170
  %528 = vmatpush1.bf16.msra.mxu0 %v169
  %529 = vmatprep.subr.bf16.mxu0 %v167
  %530 = vmatpush1.bf16.msra.mxu0 %v166
  %531 = vmatprep.subr.bf16.mxu0 %v164
  %532 = vmatpush1.bf16.msra.mxu0 %v163
  %533 = vmatprep.subr.bf16.mxu0 %v161
  %534 = vmatpush1.bf16.msra.mxu0 %v160
  %535 = vmatprep.subr.bf16.mxu0 %v158
  %536 = vmatpush1.bf16.msra.mxu0 %v157
  %537 = vmatprep.subr.bf16.mxu0 %v155
  %538 = vmatpush1.bf16.msra.mxu0 %v154
  %539 = vmatprep.subr.bf16.mxu0 0
  %540 = vmatpush2.bf16.msra.mxu0 0
  %541 = vmatprep.subr.bf16.mxu0 0
  %542 = vmatpush2.bf16.msra.mxu0 0
  %543 = vmatprep.subr.bf16.mxu0 0
  %544 = vmatpush2.bf16.msra.mxu0 0
  %545 = vmatprep.subr.bf16.mxu0 0
  %546 = vmatpush2.bf16.msra.mxu0 0
  %547 = vmatprep.subr.bf16.mxu0 0
  %548 = vmatpush2.bf16.msra.mxu0 0
  %549 = vmatprep.subr.bf16.mxu0 0
  %550 = vmatpush2.bf16.msra.mxu0 0
  %551 = vmatprep.subr.bf16.mxu0 0
  %552 = vmatpush2.bf16.msra.mxu0 0
  %553 = vmatprep.subr.bf16.mxu0 0
  %554 = vmatpush2.bf16.msra.mxu0 0
  %555 = vmatprep.mubr.bf16.mxu0 0
  %556 = vmatmul.mubr.bf16.gmra.mxu0 %v522
  %v557 = vpop.f32.mrf.mxu0
  %v558 = vadd.f32 %v62, %v557
  %v559 = vpop.f32.mrf.mxu0
  %v560 = vadd.f32 %v66, %v559
  %v561 = vpop.f32.mrf.mxu0
  %v562 = vpop.f32.mrf.mxu0
  %563 = vdwg.mxu0
  %564 = vmatprep.subr.bf16.mxu0 0
  %565 = vmatpush1.bf16.msra.mxu0 %v177
  %566 = vmatprep.subr.bf16.mxu0 0
  %567 = vmatpush1.bf16.msra.mxu0 %v174
  %568 = vmatprep.subr.bf16.mxu0 0
  %569 = vmatpush1.bf16.msra.mxu0 %v171
  %570 = vmatprep.subr.bf16.mxu0 0
  %571 = vmatpush1.bf16.msra.mxu0 %v168
  %572 = vmatprep.subr.bf16.mxu0 0
  %573 = vmatpush1.bf16.msra.mxu0 %v165
  %574 = vmatprep.subr.bf16.mxu0 0
  %575 = vmatpush1.bf16.msra.mxu0 %v162
  %576 = vmatprep.subr.bf16.mxu0 0
  %577 = vmatpush1.bf16.msra.mxu0 %v159
  %578 = vmatprep.subr.bf16.mxu0 0
  %579 = vmatpush1.bf16.msra.mxu0 %v156
  %580 = vmatprep.subr.bf16.mxu0 0
  %581 = vmatpush2.bf16.msra.mxu0 0
  %582 = vmatprep.subr.bf16.mxu0 0
  %583 = vmatpush2.bf16.msra.mxu0 0
  %584 = vmatprep.subr.bf16.mxu0 0
  %585 = vmatpush2.bf16.msra.mxu0 0
  %586 = vmatprep.subr.bf16.mxu0 0
  %587 = vmatpush2.bf16.msra.mxu0 0
  %588 = vmatprep.subr.bf16.mxu0 0
  %589 = vmatpush2.bf16.msra.mxu0 0
  %590 = vmatprep.subr.bf16.mxu0 0
  %591 = vmatpush2.bf16.msra.mxu0 0
  %592 = vmatprep.subr.bf16.mxu0 0
  %593 = vmatpush2.bf16.msra.mxu0 0
  %594 = vmatprep.subr.bf16.mxu0 0
  %595 = vmatpush2.bf16.msra.mxu0 0
  %596 = vmatprep.mubr.bf16.mxu0 0
  %597 = vmatmul.mubr.bf16.gmra.mxu0 %v522
  %v598 = vpop.f32.mrf.mxu0
  %v599 = vadd.f32 %v70, %v598
  %v600 = vpop.f32.mrf.mxu0
  %v601 = vpop.f32.mrf.mxu0
  %v602 = vpop.f32.mrf.mxu0
  %603 = vdwg.mxu0
  %v604 = vadd.f32 %v519, %v558
  %v605 = vxor.u32 %v604, 2147483648
  %v606 = vmul.f32 %v605, 1.442695
  %v607 = vpow.pop %v606
  %v608 = vadd.f32 %v607, 1.0
  %v609 = vrcp.pop %v608
  %v610 = vmul.f32 1.0, %v609
  %v611 = vadd.f32 %v520, %v560
  %v612 = vxor.u32 %v611, 2147483648
  %v613 = vmul.f32 %v612, 1.442695
  %v614 = vpow.pop %v613
  %v615 = vadd.f32 %v614, 1.0
  %v616 = vrcp.pop %v615
  %v617 = vmul.f32 1.0, %v616
  %v618 = vmul.f32 %v610, %v599
  %v619 = vadd.f32 %v521, %v618
  %v620 = vtanh.pop %v619
  %v621 = vsub.f32 1.0, %v617
  %v622 = vmul.f32 %v621, %v620
  %v623 = vmul.f32 %v617, %v517
  %v624 = vadd.f32 %v622, %v623
  %s625 = scalar_lea.vmem %s0, 96
  %v626 = vld [vmem:[%s625] sm:$0xff]
  %v627 = vld [vmem:[%s625 + $0x8] sm:$0xff]
  %v628 = vld [vmem:[%s625 + $0x10] sm:$0xff]
  %v629 = vpack.c.bf16 %v624, %v624
  %630 = vmatprep.subr.bf16.mxu0 %v176
  %631 = vmatpush1.bf16.msra.mxu0 %v175
  %632 = vmatprep.subr.bf16.mxu0 %v173
  %633 = vmatpush1.bf16.msra.mxu0 %v172
  %634 = vmatprep.subr.bf16.mxu0 %v170
  %635 = vmatpush1.bf16.msra.mxu0 %v169
  %636 = vmatprep.subr.bf16.mxu0 %v167
  %637 = vmatpush1.bf16.msra.mxu0 %v166
  %638 = vmatprep.subr.bf16.mxu0 %v164
  %639 = vmatpush1.bf16.msra.mxu0 %v163
  %640 = vmatprep.subr.bf16.mxu0 %v161
  %641 = vmatpush1.bf16.msra.mxu0 %v160
  %642 = vmatprep.subr.bf16.mxu0 %v158
  %643 = vmatpush1.bf16.msra.mxu0 %v157
  %644 = vmatprep.subr.bf16.mxu0 %v155
  %645 = vmatpush1.bf16.msra.mxu0 %v154
  %646 = vmatprep.subr.bf16.mxu0 0
  %647 = vmatpush2.bf16.msra.mxu0 0
  %648 = vmatprep.subr.bf16.mxu0 0
  %649 = vmatpush2.bf16.msra.mxu0 0
  %650 = vmatprep.subr.bf16.mxu0 0
  %651 = vmatpush2.bf16.msra.mxu0 0
  %652 = vmatprep.subr.bf16.mxu0 0
  %653 = vmatpush2.bf16.msra.mxu0 0
  %654 = vmatprep.subr.bf16.mxu0 0
  %655 = vmatpush2.bf16.msra.mxu0 0
  %656 = vmatprep.subr.bf16.mxu0 0
  %657 = vmatpush2.bf16.msra.mxu0 0
  %658 = vmatprep.subr.bf16.mxu0 0
  %659 = vmatpush2.bf16.msra.mxu0 0
  %660 = vmatprep.subr.bf16.mxu0 0
  %661 = vmatpush2.bf16.msra.mxu0 0
  %662 = vmatprep.mubr.bf16.mxu0 0
  %663 = vmatmul.mubr.bf16.gmra.mxu0 %v629
  %v664 = vpop.f32.mrf.mxu0
  %v665 = vadd.f32 %v62, %v664
  %v666 = vpop.f32.mrf.mxu0
  %v667 = vadd.f32 %v66, %v666
  %v668 = vpop.f32.mrf.mxu0
  %v669 = vpop.f32.mrf.mxu0
  %670 = vdwg.mxu0
  %671 = vmatprep.subr.bf16.mxu0 0
  %672 = vmatpush1.bf16.msra.mxu0 %v177
  %673 = vmatprep.subr.bf16.mxu0 0
  %674 = vmatpush1.bf16.msra.mxu0 %v174
  %675 = vmatprep.subr.bf16.mxu0 0
  %676 = vmatpush1.bf16.msra.mxu0 %v171
  %677 = vmatprep.subr.bf16.mxu0 0
  %678 = vmatpush1.bf16.msra.mxu0 %v168
  %679 = vmatprep.subr.bf16.mxu0 0
  %680 = vmatpush1.bf16.msra.mxu0 %v165
  %681 = vmatprep.subr.bf16.mxu0 0
  %682 = vmatpush1.bf16.msra.mxu0 %v162
  %683 = vmatprep.subr.bf16.mxu0 0
  %684 = vmatpush1.bf16.msra.mxu0 %v159
  %685 = vmatprep.subr.bf16.mxu0 0
  %686 = vmatpush1.bf16.msra.mxu0 %v156
  %687 = vmatprep.subr.bf16.mxu0 0
  %688 = vmatpush2.bf16.msra.mxu0 0
  %689 = vmatprep.subr.bf16.mxu0 0
  %690 = vmatpush2.bf16.msra.mxu0 0
  %691 = vmatprep.subr.bf16.mxu0 0
  %692 = vmatpush2.bf16.msra.mxu0 0
  %693 = vmatprep.subr.bf16.mxu0 0
  %694 = vmatpush2.bf16.msra.mxu0 0
  %695 = vmatprep.subr.bf16.mxu0 0
  %696 = vmatpush2.bf16.msra.mxu0 0
  %697 = vmatprep.subr.bf16.mxu0 0
  %698 = vmatpush2.bf16.msra.mxu0 0
  %699 = vmatprep.subr.bf16.mxu0 0
  %700 = vmatpush2.bf16.msra.mxu0 0
  %701 = vmatprep.subr.bf16.mxu0 0
  %702 = vmatpush2.bf16.msra.mxu0 0
  %703 = vmatprep.mubr.bf16.mxu0 0
  %704 = vmatmul.mubr.bf16.gmra.mxu0 %v629
  %v705 = vpop.f32.mrf.mxu0
  %v706 = vadd.f32 %v70, %v705
  %v707 = vpop.f32.mrf.mxu0
  %v708 = vpop.f32.mrf.mxu0
  %v709 = vpop.f32.mrf.mxu0
  %710 = vdwg.mxu0
  %v711 = vadd.f32 %v626, %v665
  %v712 = vxor.u32 %v711, 2147483648
  %v713 = vmul.f32 %v712, 1.442695
  %v714 = vpow.pop %v713
  %v715 = vadd.f32 %v714, 1.0
  %v716 = vrcp.pop %v715
  %v717 = vmul.f32 1.0, %v716
  %v718 = vadd.f32 %v627, %v667
  %v719 = vxor.u32 %v718, 2147483648
  %v720 = vmul.f32 %v719, 1.442695
  %v721 = vpow.pop %v720
  %v722 = vadd.f32 %v721, 1.0
  %v723 = vrcp.pop %v722
  %v724 = vmul.f32 1.0, %v723
  %v725 = vmul.f32 %v717, %v706
  %v726 = vadd.f32 %v628, %v725
  %v727 = vtanh.pop %v726
  %v728 = vsub.f32 1.0, %v724
  %v729 = vmul.f32 %v728, %v727
  %v730 = vmul.f32 %v724, %v624
  %v731 = vadd.f32 %v729, %v730
  %s732 = scalar_lea.vmem %s0, 120
  %v733 = vld [vmem:[%s732] sm:$0xff]
  %v734 = vld [vmem:[%s732 + $0x8] sm:$0xff]
  %v735 = vld [vmem:[%s732 + $0x10] sm:$0xff]
  %v736 = vpack.c.bf16 %v731, %v731
  %737 = vmatprep.subr.bf16.mxu0 %v176
  %738 = vmatpush1.bf16.msra.mxu0 %v175
  %739 = vmatprep.subr.bf16.mxu0 %v173
  %740 = vmatpush1.bf16.msra.mxu0 %v172
  %741 = vmatprep.subr.bf16.mxu0 %v170
  %742 = vmatpush1.bf16.msra.mxu0 %v169
  %743 = vmatprep.subr.bf16.mxu0 %v167
  %744 = vmatpush1.bf16.msra.mxu0 %v166
  %745 = vmatprep.subr.bf16.mxu0 %v164
  %746 = vmatpush1.bf16.msra.mxu0 %v163
  %747 = vmatprep.subr.bf16.mxu0 %v161
  %748 = vmatpush1.bf16.msra.mxu0 %v160
  %749 = vmatprep.subr.bf16.mxu0 %v158
  %750 = vmatpush1.bf16.msra.mxu0 %v157
  %751 = vmatprep.subr.bf16.mxu0 %v155
  %752 = vmatpush1.bf16.msra.mxu0 %v154
  %753 = vmatprep.subr.bf16.mxu0 0
  %754 = vmatpush2.bf16.msra.mxu0 0
  %755 = vmatprep.subr.bf16.mxu0 0
  %756 = vmatpush2.bf16.msra.mxu0 0
  %757 = vmatprep.subr.bf16.mxu0 0
  %758 = vmatpush2.bf16.msra.mxu0 0
  %759 = vmatprep.subr.bf16.mxu0 0
  %760 = vmatpush2.bf16.msra.mxu0 0
  %761 = vmatprep.subr.bf16.mxu0 0
  %762 = vmatpush2.bf16.msra.mxu0 0
  %763 = vmatprep.subr.bf16.mxu0 0
  %764 = vmatpush2.bf16.msra.mxu0 0
  %765 = vmatprep.subr.bf16.mxu0 0
  %766 = vmatpush2.bf16.msra.mxu0 0
  %767 = vmatprep.subr.bf16.mxu0 0
  %768 = vmatpush2.bf16.msra.mxu0 0
  %769 = vmatprep.mubr.bf16.mxu0 0
  %770 = vmatmul.mubr.bf16.gmra.mxu0 %v736
  %v771 = vpop.f32.mrf.mxu0
  %v772 = vadd.f32 %v62, %v771
  %v773 = vpop.f32.mrf.mxu0
  %v774 = vadd.f32 %v66, %v773
  %v775 = vpop.f32.mrf.mxu0
  %v776 = vpop.f32.mrf.mxu0
  %777 = vdwg.mxu0
  %778 = vmatprep.subr.bf16.mxu0 0
  %779 = vmatpush1.bf16.msra.mxu0 %v177
  %780 = vmatprep.subr.bf16.mxu0 0
  %781 = vmatpush1.bf16.msra.mxu0 %v174
  %782 = vmatprep.subr.bf16.mxu0 0
  %783 = vmatpush1.bf16.msra.mxu0 %v171
  %784 = vmatprep.subr.bf16.mxu0 0
  %785 = vmatpush1.bf16.msra.mxu0 %v168
  %786 = vmatprep.subr.bf16.mxu0 0
  %787 = vmatpush1.bf16.msra.mxu0 %v165
  %788 = vmatprep.subr.bf16.mxu0 0
  %789 = vmatpush1.bf16.msra.mxu0 %v162
  %790 = vmatprep.subr.bf16.mxu0 0
  %791 = vmatpush1.bf16.msra.mxu0 %v159
  %792 = vmatprep.subr.bf16.mxu0 0
  %793 = vmatpush1.bf16.msra.mxu0 %v156
  %794 = vmatprep.subr.bf16.mxu0 0
  %795 = vmatpush2.bf16.msra.mxu0 0
  %796 = vmatprep.subr.bf16.mxu0 0
  %797 = vmatpush2.bf16.msra.mxu0 0
  %798 = vmatprep.subr.bf16.mxu0 0
  %799 = vmatpush2.bf16.msra.mxu0 0
  %800 = vmatprep.subr.bf16.mxu0 0
  %801 = vmatpush2.bf16.msra.mxu0 0
  %802 = vmatprep.subr.bf16.mxu0 0
  %803 = vmatpush2.bf16.msra.mxu0 0
  %804 = vmatprep.subr.bf16.mxu0 0
  %805 = vmatpush2.bf16.msra.mxu0 0
  %806 = vmatprep.subr.bf16.mxu0 0
  %807 = vmatpush2.bf16.msra.mxu0 0
  %808 = vmatprep.subr.bf16.mxu0 0
  %809 = vmatpush2.bf16.msra.mxu0 0
  %810 = vmatprep.mubr.bf16.mxu0 0
  %811 = vmatmul.mubr.bf16.gmra.mxu0 %v736
  %v812 = vpop.f32.mrf.mxu0
  %v813 = vadd.f32 %v70, %v812
  %v814 = vpop.f32.mrf.mxu0
  %v815 = vpop.f32.mrf.mxu0
  %v816 = vpop.f32.mrf.mxu0
  %817 = vdwg.mxu0
  %v818 = vadd.f32 %v733, %v772
  %v819 = vxor.u32 %v818, 2147483648
  %v820 = vmul.f32 %v819, 1.442695
  %v821 = vpow.pop %v820
  %v822 = vadd.f32 %v821, 1.0
  %v823 = vrcp.pop %v822
  %v824 = vmul.f32 1.0, %v823
  %v825 = vadd.f32 %v734, %v774
  %v826 = vxor.u32 %v825, 2147483648
  %v827 = vmul.f32 %v826, 1.442695
  %v828 = vpow.pop %v827
  %v829 = vadd.f32 %v828, 1.0
  %v830 = vrcp.pop %v829
  %v831 = vmul.f32 1.0, %v830
  %v832 = vmul.f32 %v824, %v813
  %v833 = vadd.f32 %v735, %v832
  %v834 = vtanh.pop %v833
  %v835 = vsub.f32 1.0, %v831
  %v836 = vmul.f32 %v835, %v834
  %v837 = vmul.f32 %v831, %v731
  %v838 = vadd.f32 %v836, %v837
  %s839 = scalar_lea.vmem %s0, 144
  %v840 = vld [vmem:[%s839] sm:$0xff]
  %v841 = vld [vmem:[%s839 + $0x8] sm:$0xff]
  %v842 = vld [vmem:[%s839 + $0x10] sm:$0xff]
  %v843 = vpack.c.bf16 %v838, %v838
  %844 = vmatprep.subr.bf16.mxu0 %v176
  %845 = vmatpush1.bf16.msra.mxu0 %v175
  %846 = vmatprep.subr.bf16.mxu0 %v173
  %847 = vmatpush1.bf16.msra.mxu0 %v172
  %848 = vmatprep.subr.bf16.mxu0 %v170
  %849 = vmatpush1.bf16.msra.mxu0 %v169
  %850 = vmatprep.subr.bf16.mxu0 %v167
  %851 = vmatpush1.bf16.msra.mxu0 %v166
  %852 = vmatprep.subr.bf16.mxu0 %v164
  %853 = vmatpush1.bf16.msra.mxu0 %v163
  %854 = vmatprep.subr.bf16.mxu0 %v161
  %855 = vmatpush1.bf16.msra.mxu0 %v160
  %856 = vmatprep.subr.bf16.mxu0 %v158
  %857 = vmatpush1.bf16.msra.mxu0 %v157
  %858 = vmatprep.subr.bf16.mxu0 %v155
  %859 = vmatpush1.bf16.msra.mxu0 %v154
  %860 = vmatprep.subr.bf16.mxu0 0
  %861 = vmatpush2.bf16.msra.mxu0 0
  %862 = vmatprep.subr.bf16.mxu0 0
  %863 = vmatpush2.bf16.msra.mxu0 0
  %864 = vmatprep.subr.bf16.mxu0 0
  %865 = vmatpush2.bf16.msra.mxu0 0
  %866 = vmatprep.subr.bf16.mxu0 0
  %867 = vmatpush2.bf16.msra.mxu0 0
  %868 = vmatprep.subr.bf16.mxu0 0
  %869 = vmatpush2.bf16.msra.mxu0 0
  %870 = vmatprep.subr.bf16.mxu0 0
  %871 = vmatpush2.bf16.msra.mxu0 0
  %872 = vmatprep.subr.bf16.mxu0 0
  %873 = vmatpush2.bf16.msra.mxu0 0
  %874 = vmatprep.subr.bf16.mxu0 0
  %875 = vmatpush2.bf16.msra.mxu0 0
  %876 = vmatprep.mubr.bf16.mxu0 0
  %877 = vmatmul.mubr.bf16.gmra.mxu0 %v843
  %v878 = vpop.f32.mrf.mxu0
  %v879 = vadd.f32 %v62, %v878
  %v880 = vpop.f32.mrf.mxu0
  %v881 = vadd.f32 %v66, %v880
  %v882 = vpop.f32.mrf.mxu0
  %v883 = vpop.f32.mrf.mxu0
  %884 = vdwg.mxu0
  %885 = vmatprep.subr.bf16.mxu0 0
  %886 = vmatpush1.bf16.msra.mxu0 %v177
  %887 = vmatprep.subr.bf16.mxu0 0
  %888 = vmatpush1.bf16.msra.mxu0 %v174
  %889 = vmatprep.subr.bf16.mxu0 0
  %890 = vmatpush1.bf16.msra.mxu0 %v171
  %891 = vmatprep.subr.bf16.mxu0 0
  %892 = vmatpush1.bf16.msra.mxu0 %v168
  %893 = vmatprep.subr.bf16.mxu0 0
  %894 = vmatpush1.bf16.msra.mxu0 %v165
  %895 = vmatprep.subr.bf16.mxu0 0
  %896 = vmatpush1.bf16.msra.mxu0 %v162
  %897 = vmatprep.subr.bf16.mxu0 0
  %898 = vmatpush1.bf16.msra.mxu0 %v159
  %899 = vmatprep.subr.bf16.mxu0 0
  %900 = vmatpush1.bf16.msra.mxu0 %v156
  %901 = vmatprep.subr.bf16.mxu0 0
  %902 = vmatpush2.bf16.msra.mxu0 0
  %903 = vmatprep.subr.bf16.mxu0 0
  %904 = vmatpush2.bf16.msra.mxu0 0
  %905 = vmatprep.subr.bf16.mxu0 0
  %906 = vmatpush2.bf16.msra.mxu0 0
  %907 = vmatprep.subr.bf16.mxu0 0
  %908 = vmatpush2.bf16.msra.mxu0 0
  %909 = vmatprep.subr.bf16.mxu0 0
  %910 = vmatpush2.bf16.msra.mxu0 0
  %911 = vmatprep.subr.bf16.mxu0 0
  %912 = vmatpush2.bf16.msra.mxu0 0
  %913 = vmatprep.subr.bf16.mxu0 0
  %914 = vmatpush2.bf16.msra.mxu0 0
  %915 = vmatprep.subr.bf16.mxu0 0
  %916 = vmatpush2.bf16.msra.mxu0 0
  %917 = vmatprep.mubr.bf16.mxu0 0
  %918 = vmatmul.mubr.bf16.gmra.mxu0 %v843
  %v919 = vpop.f32.mrf.mxu0
  %v920 = vadd.f32 %v70, %v919
  %v921 = vpop.f32.mrf.mxu0
  %v922 = vpop.f32.mrf.mxu0
  %v923 = vpop.f32.mrf.mxu0
  %924 = vdwg.mxu0
  %v925 = vadd.f32 %v840, %v879
  %v926 = vxor.u32 %v925, 2147483648
  %v927 = vmul.f32 %v926, 1.442695
  %v928 = vpow.pop %v927
  %v929 = vadd.f32 %v928, 1.0
  %v930 = vrcp.pop %v929
  %v931 = vmul.f32 1.0, %v930
  %v932 = vadd.f32 %v841, %v881
  %v933 = vxor.u32 %v932, 2147483648
  %v934 = vmul.f32 %v933, 1.442695
  %v935 = vpow.pop %v934
  %v936 = vadd.f32 %v935, 1.0
  %v937 = vrcp.pop %v936
  %v938 = vmul.f32 1.0, %v937
  %v939 = vmul.f32 %v931, %v920
  %v940 = vadd.f32 %v842, %v939
  %v941 = vtanh.pop %v940
  %v942 = vsub.f32 1.0, %v938
  %v943 = vmul.f32 %v942, %v941
  %v944 = vmul.f32 %v938, %v838
  %v945 = vadd.f32 %v943, %v944
  %s946 = scalar_lea.vmem %s0, 168
  %v947 = vld [vmem:[%s946] sm:$0xff]
  %v948 = vld [vmem:[%s946 + $0x8] sm:$0xff]
  %v949 = vld [vmem:[%s946 + $0x10] sm:$0xff]
  %v950 = vpack.c.bf16 %v945, %v945
  %951 = vmatprep.subr.bf16.mxu0 %v176
  %952 = vmatpush1.bf16.msra.mxu0 %v175
  %953 = vmatprep.subr.bf16.mxu0 %v173
  %954 = vmatpush1.bf16.msra.mxu0 %v172
  %955 = vmatprep.subr.bf16.mxu0 %v170
  %956 = vmatpush1.bf16.msra.mxu0 %v169
  %957 = vmatprep.subr.bf16.mxu0 %v167
  %958 = vmatpush1.bf16.msra.mxu0 %v166
  %959 = vmatprep.subr.bf16.mxu0 %v164
  %960 = vmatpush1.bf16.msra.mxu0 %v163
  %961 = vmatprep.subr.bf16.mxu0 %v161
  %962 = vmatpush1.bf16.msra.mxu0 %v160
  %963 = vmatprep.subr.bf16.mxu0 %v158
  %964 = vmatpush1.bf16.msra.mxu0 %v157
  %965 = vmatprep.subr.bf16.mxu0 %v155
  %966 = vmatpush1.bf16.msra.mxu0 %v154
  %967 = vmatprep.subr.bf16.mxu0 0
  %968 = vmatpush2.bf16.msra.mxu0 0
  %969 = vmatprep.subr.bf16.mxu0 0
  %970 = vmatpush2.bf16.msra.mxu0 0
  %971 = vmatprep.subr.bf16.mxu0 0
  %972 = vmatpush2.bf16.msra.mxu0 0
  %973 = vmatprep.subr.bf16.mxu0 0
  %974 = vmatpush2.bf16.msra.mxu0 0
  %975 = vmatprep.subr.bf16.mxu0 0
  %976 = vmatpush2.bf16.msra.mxu0 0
  %977 = vmatprep.subr.bf16.mxu0 0
  %978 = vmatpush2.bf16.msra.mxu0 0
  %979 = vmatprep.subr.bf16.mxu0 0
  %980 = vmatpush2.bf16.msra.mxu0 0
  %981 = vmatprep.subr.bf16.mxu0 0
  %982 = vmatpush2.bf16.msra.mxu0 0
  %983 = vmatprep.mubr.bf16.mxu0 0
  %984 = vmatmul.mubr.bf16.gmra.mxu0 %v950
  %v985 = vpop.f32.mrf.mxu0
  %v986 = vadd.f32 %v62, %v985
  %v987 = vpop.f32.mrf.mxu0
  %v988 = vadd.f32 %v66, %v987
  %v989 = vpop.f32.mrf.mxu0
  %v990 = vpop.f32.mrf.mxu0
  %991 = vdwg.mxu0
  %992 = vmatprep.subr.bf16.mxu0 0
  %993 = vmatpush1.bf16.msra.mxu0 %v177
  %994 = vmatprep.subr.bf16.mxu0 0
  %995 = vmatpush1.bf16.msra.mxu0 %v174
  %996 = vmatprep.subr.bf16.mxu0 0
  %997 = vmatpush1.bf16.msra.mxu0 %v171
  %998 = vmatprep.subr.bf16.mxu0 0
  %999 = vmatpush1.bf16.msra.mxu0 %v168
  %1000 = vmatprep.subr.bf16.mxu0 0
  %1001 = vmatpush1.bf16.msra.mxu0 %v165
  %1002 = vmatprep.subr.bf16.mxu0 0
  %1003 = vmatpush1.bf16.msra.mxu0 %v162
  %1004 = vmatprep.subr.bf16.mxu0 0
  %1005 = vmatpush1.bf16.msra.mxu0 %v159
  %1006 = vmatprep.subr.bf16.mxu0 0
  %1007 = vmatpush1.bf16.msra.mxu0 %v156
  %1008 = vmatprep.subr.bf16.mxu0 0
  %1009 = vmatpush2.bf16.msra.mxu0 0
  %1010 = vmatprep.subr.bf16.mxu0 0
  %1011 = vmatpush2.bf16.msra.mxu0 0
  %1012 = vmatprep.subr.bf16.mxu0 0
  %1013 = vmatpush2.bf16.msra.mxu0 0
  %1014 = vmatprep.subr.bf16.mxu0 0
  %1015 = vmatpush2.bf16.msra.mxu0 0
  %1016 = vmatprep.subr.bf16.mxu0 0
  %1017 = vmatpush2.bf16.msra.mxu0 0
  %1018 = vmatprep.subr.bf16.mxu0 0
  %1019 = vmatpush2.bf16.msra.mxu0 0
  %1020 = vmatprep.subr.bf16.mxu0 0
  %1021 = vmatpush2.bf16.msra.mxu0 0
  %1022 = vmatprep.subr.bf16.mxu0 0
  %1023 = vmatpush2.bf16.msra.mxu0 0
  %1024 = vmatprep.mubr.bf16.mxu0 0
  %1025 = vmatmul.mubr.bf16.gmra.mxu0 %v950
  %v1026 = vpop.f32.mrf.mxu0
  %v1027 = vadd.f32 %v70, %v1026
  %v1028 = vpop.f32.mrf.mxu0
  %v1029 = vpop.f32.mrf.mxu0
  %v1030 = vpop.f32.mrf.mxu0
  %1031 = vdwg.mxu0
  %v1032 = vadd.f32 %v947, %v986
  %v1033 = vxor.u32 %v1032, 2147483648
  %v1034 = vmul.f32 %v1033, 1.442695
  %v1035 = vpow.pop %v1034
  %v1036 = vadd.f32 %v1035, 1.0
  %v1037 = vrcp.pop %v1036
  %v1038 = vmul.f32 1.0, %v1037
  %v1039 = vadd.f32 %v948, %v988
  %v1040 = vxor.u32 %v1039, 2147483648
  %v1041 = vmul.f32 %v1040, 1.442695
  %v1042 = vpow.pop %v1041
  %v1043 = vadd.f32 %v1042, 1.0
  %v1044 = vrcp.pop %v1043
  %v1045 = vmul.f32 1.0, %v1044
  %v1046 = vmul.f32 %v1038, %v1027
  %v1047 = vadd.f32 %v949, %v1046
  %v1048 = vtanh.pop %v1047
  %v1049 = vsub.f32 1.0, %v1045
  %v1050 = vmul.f32 %v1049, %v1048
  %v1051 = vmul.f32 %v1045, %v945
  %v1052 = vadd.f32 %v1050, %v1051
  %1053 = vst [vmem:[%s3] sm:$0xff] %v1052
  // Predicated region
  $region18: #{gru_model_forward.4} parent=0 // pred_check
    _
  $region19: #{gru_model_forward.4} parent=0 // pred_check_branch
    %1055 = sbr.rel (0) target = $region21
  $region20: #{gru_model_forward.4} parent=0 // pred_region
    _
  $region21: #{gru_model_forward.4} parent=0 // pred_fallthru
    _
  // Predicated region
  $region22: #{gru_model_forward.4} parent=0 // pred_check
    _
  $region23: #{gru_model_forward.4} parent=0 // pred_check_branch
    %1057 = sbr.rel (0) target = $region25
  $region24: #{gru_model_forward.4} parent=0 // pred_region
    _
  $region25: #{gru_model_forward.4} parent=0 // pred_fallthru
    _

</llo_original>
